<compile_context>
chip_gen: v7x
topology: tpu7x:2x2x1
jax: 0.10.0
libtpu: 0.0.40
codegen_flags: <defaults>
</compile_context>

<pallas_src>
import functools

import jax
import jax.numpy as jnp
from jax.experimental import pallas as pl
from jax.experimental.pallas import tpu as pltpu


# ----------------------------- Pallas kernel --------------------------------
def _transformer_block_kernel(
    x_ref,
    g1_ref, w1_ref, b1_ref, w2_ref, b2_ref,            # feed_forward: RMSNorm g, GEGLU, l_2
    wrz1_ref, brz1_ref, win1_ref, whn1_ref, bin1_ref, bhn1_ref,   # feed_forward GRUCell
    wrz2_ref, brz2_ref, win2_ref, whn2_ref, bin2_ref, bhn2_ref,   # attn GRUCell
    g3_ref,                                            # mlp RMSNorm g
    wrz3_ref, brz3_ref, win3_ref, whn3_ref, bin3_ref, bhn3_ref,   # mlp GRUCell
    o_ref,
):
    x = x_ref[...]                       # (TM, D) float32
    D = x.shape[-1]
    scale = float(D) ** -0.5
    eps = 1e-8
    bf16 = jnp.bfloat16

    def rmsnorm(v, g):
        # torch.norm(x, dim=-1, keepdim=True) * dim**-0.5 ; clamp(min=eps)
        nrm = jnp.sqrt(jnp.sum(v * v, axis=-1, keepdims=True)) * scale
        nrm = jnp.maximum(nrm, eps)
        return v / nrm * g

    def sigmoid(v):
        # exp on the EUP, approx reciprocal on vrcp (cheaper than 1/(1+exp) divide).
        ex = jnp.exp(-jnp.maximum(v, -60.0))     # clamp avoids inf into vrcp
        return pl.reciprocal(1.0 + ex, approx=True)

    def gelu_tanh(v):
        c = 0.7978845608028654  # sqrt(2/pi)
        return 0.5 * v * (1.0 + jnp.tanh(c * (v + 0.044715 * v * v * v)))

    def gru_cell(inp, hid, wrz_ref, brz_ref, win_ref, whn_ref, bin_ref, bhn_ref):
        # PyTorch nn.GRUCell semantics, gate order (r, z, n).
        # r/z gates fused into one K=2D matmul; n-gate kept split so that
        # n = tanh(W_in x + b_in + r * (W_hn h + b_hn)) is exact.
        inp_b = inp.astype(bf16)
        hid_b = hid.astype(bf16)
        cat = jnp.concatenate([inp_b, hid_b], axis=-1)           # (TM, 2D) bf16
        rz = jnp.dot(cat, wrz_ref[...],
                     preferred_element_type=jnp.float32) + brz_ref[...]
        r = sigmoid(rz[:, :D])
        z = sigmoid(rz[:, D:])
        i_n = jnp.dot(inp_b, win_ref[...],
                      preferred_element_type=jnp.float32) + bin_ref[...]
        h_n = jnp.dot(hid_b, whn_ref[...],
                      preferred_element_type=jnp.float32) + bhn_ref[...]
        n = jnp.tanh(i_n + r * h_n)
        return (1.0 - z) * n + z * hid

    # ---- feed_forward = GRUGating(d_model, fn=FFd(...)) ----
    y = rmsnorm(x, g1_ref[...])
    h = jnp.dot(y.astype(bf16), w1_ref[...],
                preferred_element_type=jnp.float32) + b1_ref[...]
    dd = h.shape[-1] // 2
    u = h[:, :dd] * gelu_tanh(h[:, dd:])                         # GEGLU
    v = sigmoid(jnp.dot(u.astype(bf16), w2_ref[...],
                        preferred_element_type=jnp.float32) + b2_ref[...])
    # TODO(synk): FFd branch fns (PKM, ConformerConvModule, FNO1d, Hopfield) and
    #             the concat->Linear reduction were not provided; omitted.
    out1 = gru_cell(v, x, wrz1_ref, brz1_ref, win1_ref, whn1_ref, bin1_ref, bhn1_ref)

    # ---- attn = GRUGating(d_model, fn=ET_Encoder_Block, norm=False) ----
    # TODO(synk): ET_Encoder_Block attention core not provided; fn treated as Identity.
    out2 = gru_cell(out1, out1, wrz2_ref, brz2_ref, win2_ref, whn2_ref, bin2_ref, bhn2_ref)

    # ---- mlp = GRUGating(d_model, fn=gMLPGPT) ----
    # TODO(synk): gMLPGPT core not provided; fn treated as Identity.
    y3 = rmsnorm(out2, g3_ref[...])
    out3 = gru_cell(y3, out2, wrz3_ref, brz3_ref, win3_ref, whn3_ref, bin3_ref, bhn3_ref)

    o_ref[...] = out3.astype(o_ref.dtype)


# ------------------------------- wrapper -------------------------------------
def transformer_block(x, params, *, tm_cap=256):
    """x: (batch, seq, d_model) float32 -> (batch, seq, d_model) float32."""
    B, S, D = x.shape
    N = B * S
    bf16 = jnp.bfloat16

    # Row tile: largest multiple of 8 up to tm_cap; pad N to a tile multiple.
    n8 = ((N + 7) // 8) * 8
    tm = int(min(tm_cap, n8))
    n_pad = ((N + tm - 1) // tm) * tm

    xf = x.reshape(N, D)
    if n_pad != N:
        xf = jnp.pad(xf, ((0, n_pad - N), (0, 0)))

    # Restructure each GRUCell once (outside the kernel):
    #   wrz = [[Wih_rz], [Whh_rz]]  (2D, 2D)   brz = bih_rz + bhh_rz   (1, 2D)
    #   win = Wih_n (D, D), whn = Whh_n (D, D), bin/bhn kept separate.
    def split_gru(wih, whh, bih, bhh):
        wrz = jnp.concatenate([wih[:, :2 * D], whh[:, :2 * D]], axis=0).astype(bf16)
        brz = (bih[:, :2 * D] + bhh[:, :2 * D]).astype(jnp.float32)
        win = wih[:, 2 * D:].astype(bf16)
        whn = whh[:, 2 * D:].astype(bf16)
        return wrz, brz, win, whn, bih[:, 2 * D:], bhh[:, 2 * D:]

    gru1 = split_gru(params["wih1"], params["whh1"], params["bih1"], params["bhh1"])
    gru2 = split_gru(params["wih2"], params["whh2"], params["bih2"], params["bhh2"])
    gru3 = split_gru(params["wih3"], params["whh3"], params["bih3"], params["bhh3"])

    param_list = [
        params["g1"],
        params["w1"].astype(bf16), params["b1"],
        params["w2"].astype(bf16), params["b2"],
        *gru1,
        *gru2,
        params["g3"],
        *gru3,
    ]

    row_spec = pl.BlockSpec((tm, D), lambda i: (i, 0))

    def full_spec(a):
        # Whole-array operand, constant block index => no re-DMA across the grid.
        return pl.BlockSpec(a.shape, lambda i: (0,) * a.ndim)

    # Advisory cost estimate for the XLA scheduler.
    weight_bytes = sum(int(p.size) * int(p.dtype.itemsize) for p in param_list)
    flops = 48 * n_pad * D * D                      # GEGLU + l_2 + 3 GRU cells
    transcendentals = 16 * n_pad * D                # tanh / exp / reciprocal
    bytes_accessed = 2 * n_pad * D * 4 + weight_bytes

    out = pl.pallas_call(
        _transformer_block_kernel,
        out_shape=jax.ShapeDtypeStruct((n_pad, D), x.dtype),
        grid=(n_pad // tm,),
        in_specs=[row_spec] + [full_spec(p) for p in param_list],
        out_specs=row_spec,
        compiler_params=pltpu.CompilerParams(
            dimension_semantics=("parallel",),       # rows independent -> both TCs on v7x
            vmem_limit_bytes=32 * 1024 * 1024,
        ),
        cost_estimate=pl.CostEstimate(
            flops=int(flops),
            transcendentals=int(transcendentals),
            bytes_accessed=int(bytes_accessed),
        ),
    )(xf, *param_list)

    return out[:N].reshape(B, S, D)


# --------------------------- deterministic params ----------------------------
def init_params(key, d_model, dim_ffd_mult=4):
    mult = dim_ffd_mult // 2          # FFd mult = dim_ffd_mult // 2 = 2
    D = d_model
    ks = jax.random.split(key, 16)

    def nrm(k, shape, s=0.05):
        return (s * jax.random.normal(k, shape)).astype(jnp.float32)

    params = {
        # feed_forward: RMSNorm.g initialised to ones (matches torch init)
        "g1": jnp.ones((1, D), jnp.float32),
        # GEGLU proj: Linear(D, 2*D*mult) -> stored (in, out)
        "w1": nrm(ks[0], (D, 2 * D * mult)),
        "b1": nrm(ks[1], (1, 2 * D * mult)),
        # l_2: Linear(D*mult, D) + sigmoid
        "w2": nrm(ks[2], (D * mult, D)),
        "b2": nrm(ks[3], (1, D)),
        # GRUCell #1 (feed_forward gating): (in, 3D) columns ordered r,z,n.
        # NOTE: transposed vs PyTorch's (3D, D) weight_ih/weight_hh.
        "wih1": nrm(ks[4], (D, 3 * D)),
        "whh1": nrm(ks[5], (D, 3 * D)),
        "bih1": nrm(ks[6], (1, 3 * D)),
        "bhh1": nrm(ks[7], (1, 3 * D)),
        # GRUCell #2 (attn gating)
        "wih2": nrm(ks[8], (D, 3 * D)),
        "whh2": nrm(ks[9], (D, 3 * D)),
        "bih2": nrm(ks[10], (1, 3 * D)),
        "bhh2": nrm(ks[11], (1, 3 * D)),
        # mlp gating
        "g3": jnp.ones((1, D), jnp.float32),
        "wih3": nrm(ks[12], (D, 3 * D)),
        "whh3": nrm(ks[13], (D, 3 * D)),
        "bih3": nrm(ks[14], (1, 3 * D)),
        "bhh3": nrm(ks[15], (1, 3 * D)),
    }
    return params


# ---------------------------------- main --------------------------------------
if __name__ == "__main__":
    key = jax.random.PRNGKey(0)
    k_x, k_p = jax.random.split(key)

    # Small shapes consistent with the module; d_model is a lane multiple (128)
    # so GRU gate slices fall on vreg boundaries and output stores are unmasked.
    batch, seq, d_model = 2, 8, 128
    x = jax.random.normal(k_x, (batch, seq, d_model), dtype=jnp.float32)
    params = init_params(k_p, d_model)

    fn = jax.jit(functools.partial(transformer_block, tm_cap=256))
    out = fn(x, params)
    jax.block_until_ready(out)

    assert out.shape == (batch, seq, d_model)
    assert jnp.all(jnp.isfinite(out))
    print("KERNEL_OK")
</pallas_src>

<mosaic_0001>
module attributes {stable_mosaic.version = 11 : i64} {
  func.func @_transformer_block_kernel(%arg0: i32, %arg1: memref<16x128xf32, #tpu.memory_space<vmem>>, %arg2: memref<1x128xf32, #tpu.memory_space<vmem>>, %arg3: memref<128x512xbf16, #tpu.memory_space<vmem>>, %arg4: memref<1x512xf32, #tpu.memory_space<vmem>>, %arg5: memref<256x128xbf16, #tpu.memory_space<vmem>>, %arg6: memref<1x128xf32, #tpu.memory_space<vmem>>, %arg7: memref<256x256xbf16, #tpu.memory_space<vmem>>, %arg8: memref<1x256xf32, #tpu.memory_space<vmem>>, %arg9: memref<128x128xbf16, #tpu.memory_space<vmem>>, %arg10: memref<128x128xbf16, #tpu.memory_space<vmem>>, %arg11: memref<1x128xf32, #tpu.memory_space<vmem>>, %arg12: memref<1x128xf32, #tpu.memory_space<vmem>>, %arg13: memref<256x256xbf16, #tpu.memory_space<vmem>>, %arg14: memref<1x256xf32, #tpu.memory_space<vmem>>, %arg15: memref<128x128xbf16, #tpu.memory_space<vmem>>, %arg16: memref<128x128xbf16, #tpu.memory_space<vmem>>, %arg17: memref<1x128xf32, #tpu.memory_space<vmem>>, %arg18: memref<1x128xf32, #tpu.memory_space<vmem>>, %arg19: memref<1x128xf32, #tpu.memory_space<vmem>>, %arg20: memref<256x256xbf16, #tpu.memory_space<vmem>>, %arg21: memref<1x256xf32, #tpu.memory_space<vmem>>, %arg22: memref<128x128xbf16, #tpu.memory_space<vmem>>, %arg23: memref<128x128xbf16, #tpu.memory_space<vmem>>, %arg24: memref<1x128xf32, #tpu.memory_space<vmem>>, %arg25: memref<1x128xf32, #tpu.memory_space<vmem>>, %arg26: memref<16x128xf32, #tpu.memory_space<vmem>>) attributes {dimension_semantics = [#tpu.dimension_semantics<parallel>], iteration_bounds = array<i64: 1>, scalar_prefetch = 0 : i64, scratch_operands = 0 : i64, tpu.core_type = #tpu.core_type<tc>, window_params = [{transform_indices = @transform_0, window_bounds = array<i64: 16, 128>}, {pipeline_mode = #tpu.pipeline_mode<synchronous>, transform_indices = @transform_1, window_bounds = array<i64: 1, 128>}, {pipeline_mode = #tpu.pipeline_mode<synchronous>, transform_indices = @transform_2, window_bounds = array<i64: 128, 512>}, {pipeline_mode = #tpu.pipeline_mode<synchronous>, transform_indices = @transform_3, window_bounds = array<i64: 1, 512>}, {pipeline_mode = #tpu.pipeline_mode<synchronous>, transform_indices = @transform_4, window_bounds = array<i64: 256, 128>}, {pipeline_mode = #tpu.pipeline_mode<synchronous>, transform_indices = @transform_5, window_bounds = array<i64: 1, 128>}, {pipeline_mode = #tpu.pipeline_mode<synchronous>, transform_indices = @transform_6, window_bounds = array<i64: 256, 256>}, {pipeline_mode = #tpu.pipeline_mode<synchronous>, transform_indices = @transform_7, window_bounds = array<i64: 1, 256>}, {pipeline_mode = #tpu.pipeline_mode<synchronous>, transform_indices = @transform_8, window_bounds = array<i64: 128, 128>}, {pipeline_mode = #tpu.pipeline_mode<synchronous>, transform_indices = @transform_9, window_bounds = array<i64: 128, 128>}, {pipeline_mode = #tpu.pipeline_mode<synchronous>, transform_indices = @transform_10, window_bounds = array<i64: 1, 128>}, {pipeline_mode = #tpu.pipeline_mode<synchronous>, transform_indices = @transform_11, window_bounds = array<i64: 1, 128>}, {pipeline_mode = #tpu.pipeline_mode<synchronous>, transform_indices = @transform_12, window_bounds = array<i64: 256, 256>}, {pipeline_mode = #tpu.pipeline_mode<synchronous>, transform_indices = @transform_13, window_bounds = array<i64: 1, 256>}, {pipeline_mode = #tpu.pipeline_mode<synchronous>, transform_indices = @transform_14, window_bounds = array<i64: 128, 128>}, {pipeline_mode = #tpu.pipeline_mode<synchronous>, transform_indices = @transform_15, window_bounds = array<i64: 128, 128>}, {pipeline_mode = #tpu.pipeline_mode<synchronous>, transform_indices = @transform_16, window_bounds = array<i64: 1, 128>}, {pipeline_mode = #tpu.pipeline_mode<synchronous>, transform_indices = @transform_17, window_bounds = array<i64: 1, 128>}, {pipeline_mode = #tpu.pipeline_mode<synchronous>, transform_indices = @transform_18, window_bounds = array<i64: 1, 128>}, {pipeline_mode = #tpu.pipeline_mode<synchronous>, transform_indices = @transform_19, window_bounds = array<i64: 256, 256>}, {pipeline_mode = #tpu.pipeline_mode<synchronous>, transform_indices = @transform_20, window_bounds = array<i64: 1, 256>}, {pipeline_mode = #tpu.pipeline_mode<synchronous>, transform_indices = @transform_21, window_bounds = array<i64: 128, 128>}, {pipeline_mode = #tpu.pipeline_mode<synchronous>, transform_indices = @transform_22, window_bounds = array<i64: 128, 128>}, {pipeline_mode = #tpu.pipeline_mode<synchronous>, transform_indices = @transform_23, window_bounds = array<i64: 1, 128>}, {pipeline_mode = #tpu.pipeline_mode<synchronous>, transform_indices = @transform_24, window_bounds = array<i64: 1, 128>}, {transform_indices = @transform_25, window_bounds = array<i64: 16, 128>}]} {
    %c0 = arith.constant 0 : index
    %c0_0 = arith.constant 0 : index
    %0 = vector.load %arg1[%c0, %c0_0] : memref<16x128xf32, #tpu.memory_space<vmem>>, vector<16x128xf32>
    %c0_1 = arith.constant 0 : index
    %c0_2 = arith.constant 0 : index
    %1 = vector.load %arg2[%c0_1, %c0_2] : memref<1x128xf32, #tpu.memory_space<vmem>>, vector<1x128xf32>
    %2 = arith.mulf %0, %0 : vector<16x128xf32>
    %cst = arith.constant dense<0.000000e+00> : vector<16xf32>
    %3 = vector.multi_reduction <add>, %2, %cst [1] : vector<16x128xf32> to vector<16xf32>
    %4 = vector.shape_cast %3 : vector<16xf32> to vector<16x1xf32>
    %5 = math.sqrt %4 : vector<16x1xf32>
    %cst_3 = arith.constant 0.0883883461 : f32
    %6 = vector.broadcast %cst_3 : f32 to vector<16x1xf32>
    %7 = arith.mulf %5, %6 : vector<16x1xf32>
    %cst_4 = arith.constant 9.99999993E-9 : f32
    %8 = vector.broadcast %cst_4 : f32 to vector<16x1xf32>
    %9 = arith.maximumf %7, %8 : vector<16x1xf32>
    %10 = vector.broadcast %9 : vector<16x1xf32> to vector<16x128xf32>
    %11 = arith.divf %0, %10 : vector<16x128xf32>
    %12 = vector.broadcast %1 : vector<1x128xf32> to vector<16x128xf32>
    %13 = arith.mulf %11, %12 : vector<16x128xf32>
    %14 = arith.truncf %13 : vector<16x128xf32> to vector<16x128xbf16>
    %c0_5 = arith.constant 0 : index
    %c0_6 = arith.constant 0 : index
    %15 = vector.load %arg3[%c0_5, %c0_6] : memref<128x512xbf16, #tpu.memory_space<vmem>>, vector<128x512xbf16>
    %cst_7 = arith.constant dense<0.000000e+00> : vector<16x512xf32>
    %16 = tpu.matmul %14, %15, %cst_7 {dimension_numbers = #tpu.dot_dimension_numbers<[1], [0], [0], [1], [0, 0, 1, 1], [], []>} : vector<16x128xbf16>, vector<128x512xbf16>, vector<16x512xf32> -> vector<16x512xf32>
    %c0_8 = arith.constant 0 : index
    %c0_9 = arith.constant 0 : index
    %17 = vector.load %arg4[%c0_8, %c0_9] : memref<1x512xf32, #tpu.memory_space<vmem>>, vector<1x512xf32>
    %18 = vector.broadcast %17 : vector<1x512xf32> to vector<16x512xf32>
    %19 = arith.addf %16, %18 : vector<16x512xf32>
    %20 = vector.extract_strided_slice %19 {offsets = [0, 0], sizes = [16, 256], strides = [1, 1]} : vector<16x512xf32> to vector<16x256xf32>
    %21 = vector.extract_strided_slice %19 {offsets = [0, 256], sizes = [16, 256], strides = [1, 1]} : vector<16x512xf32> to vector<16x256xf32>
    %cst_10 = arith.constant 5.000000e-01 : f32
    %22 = vector.broadcast %cst_10 : f32 to vector<16x256xf32>
    %23 = arith.mulf %22, %21 : vector<16x256xf32>
    %cst_11 = arith.constant 4.471500e-02 : f32
    %24 = vector.broadcast %cst_11 : f32 to vector<16x256xf32>
    %25 = arith.mulf %24, %21 : vector<16x256xf32>
    %26 = arith.mulf %25, %21 : vector<16x256xf32>
    %27 = arith.mulf %26, %21 : vector<16x256xf32>
    %28 = arith.addf %21, %27 : vector<16x256xf32>
    %cst_12 = arith.constant 0.797884583 : f32
    %29 = vector.broadcast %cst_12 : f32 to vector<16x256xf32>
    %30 = arith.mulf %29, %28 : vector<16x256xf32>
    %31 = math.tanh %30 : vector<16x256xf32>
    %cst_13 = arith.constant 1.000000e+00 : f32
    %32 = vector.broadcast %cst_13 : f32 to vector<16x256xf32>
    %33 = arith.addf %32, %31 : vector<16x256xf32>
    %34 = arith.mulf %23, %33 : vector<16x256xf32>
    %35 = arith.mulf %20, %34 : vector<16x256xf32>
    %36 = arith.truncf %35 : vector<16x256xf32> to vector<16x256xbf16>
    %c0_14 = arith.constant 0 : index
    %c0_15 = arith.constant 0 : index
    %37 = vector.load %arg5[%c0_14, %c0_15] : memref<256x128xbf16, #tpu.memory_space<vmem>>, vector<256x128xbf16>
    %cst_16 = arith.constant dense<0.000000e+00> : vector<16x128xf32>
    %38 = tpu.matmul %36, %37, %cst_16 {dimension_numbers = #tpu.dot_dimension_numbers<[1], [0], [0], [1], [0, 0, 1, 1], [], []>} : vector<16x256xbf16>, vector<256x128xbf16>, vector<16x128xf32> -> vector<16x128xf32>
    %c0_17 = arith.constant 0 : index
    %c0_18 = arith.constant 0 : index
    %39 = vector.load %arg6[%c0_17, %c0_18] : memref<1x128xf32, #tpu.memory_space<vmem>>, vector<1x128xf32>
    %40 = vector.broadcast %39 : vector<1x128xf32> to vector<16x128xf32>
    %41 = arith.addf %38, %40 : vector<16x128xf32>
    %cst_19 = arith.constant -6.000000e+01 : f32
    %42 = vector.broadcast %cst_19 : f32 to vector<16x128xf32>
    %43 = arith.maximumf %41, %42 : vector<16x128xf32>
    %cst_20 = arith.constant 0.000000e+00 : f32
    %44 = vector.broadcast %cst_20 : f32 to vector<16x128xf32>
    %45 = arith.subf %44, %43 : vector<16x128xf32>
    %46 = math.exp %45 : vector<16x128xf32>
    %cst_21 = arith.constant 1.000000e+00 : f32
    %47 = vector.broadcast %cst_21 : f32 to vector<16x128xf32>
    %48 = arith.addf %47, %46 : vector<16x128xf32>
    %49 = tpu.reciprocal %48 {approx = true} : vector<16x128xf32> -> vector<16x128xf32>
    %50 = arith.truncf %49 : vector<16x128xf32> to vector<16x128xbf16>
    %51 = arith.truncf %0 : vector<16x128xf32> to vector<16x128xbf16>
    %52 = tpu.concatenate %50, %51 in 1 : vector<16x128xbf16>, vector<16x128xbf16> -> vector<16x256xbf16>
    %c0_22 = arith.constant 0 : index
    %c0_23 = arith.constant 0 : index
    %53 = vector.load %arg7[%c0_22, %c0_23] : memref<256x256xbf16, #tpu.memory_space<vmem>>, vector<256x256xbf16>
    %cst_24 = arith.constant dense<0.000000e+00> : vector<16x256xf32>
    %54 = tpu.matmul %52, %53, %cst_24 {dimension_numbers = #tpu.dot_dimension_numbers<[1], [0], [0], [1], [0, 0, 1, 1], [], []>} : vector<16x256xbf16>, vector<256x256xbf16>, vector<16x256xf32> -> vector<16x256xf32>
    %c0_25 = arith.constant 0 : index
    %c0_26 = arith.constant 0 : index
    %55 = vector.load %arg8[%c0_25, %c0_26] : memref<1x256xf32, #tpu.memory_space<vmem>>, vector<1x256xf32>
    %56 = vector.broadcast %55 : vector<1x256xf32> to vector<16x256xf32>
    %57 = arith.addf %54, %56 : vector<16x256xf32>
    %58 = vector.extract_strided_slice %57 {offsets = [0, 0], sizes = [16, 128], strides = [1, 1]} : vector<16x256xf32> to vector<16x128xf32>
    %cst_27 = arith.constant -6.000000e+01 : f32
    %59 = vector.broadcast %cst_27 : f32 to vector<16x128xf32>
    %60 = arith.maximumf %58, %59 : vector<16x128xf32>
    %cst_28 = arith.constant 0.000000e+00 : f32
    %61 = vector.broadcast %cst_28 : f32 to vector<16x128xf32>
    %62 = arith.subf %61, %60 : vector<16x128xf32>
    %63 = math.exp %62 : vector<16x128xf32>
    %cst_29 = arith.constant 1.000000e+00 : f32
    %64 = vector.broadcast %cst_29 : f32 to vector<16x128xf32>
    %65 = arith.addf %64, %63 : vector<16x128xf32>
    %66 = tpu.reciprocal %65 {approx = true} : vector<16x128xf32> -> vector<16x128xf32>
    %67 = vector.extract_strided_slice %57 {offsets = [0, 128], sizes = [16, 128], strides = [1, 1]} : vector<16x256xf32> to vector<16x128xf32>
    %cst_30 = arith.constant -6.000000e+01 : f32
    %68 = vector.broadcast %cst_30 : f32 to vector<16x128xf32>
    %69 = arith.maximumf %67, %68 : vector<16x128xf32>
    %cst_31 = arith.constant 0.000000e+00 : f32
    %70 = vector.broadcast %cst_31 : f32 to vector<16x128xf32>
    %71 = arith.subf %70, %69 : vector<16x128xf32>
    %72 = math.exp %71 : vector<16x128xf32>
    %cst_32 = arith.constant 1.000000e+00 : f32
    %73 = vector.broadcast %cst_32 : f32 to vector<16x128xf32>
    %74 = arith.addf %73, %72 : vector<16x128xf32>
    %75 = tpu.reciprocal %74 {approx = true} : vector<16x128xf32> -> vector<16x128xf32>
    %c0_33 = arith.constant 0 : index
    %c0_34 = arith.constant 0 : index
    %76 = vector.load %arg9[%c0_33, %c0_34] : memref<128x128xbf16, #tpu.memory_space<vmem>>, vector<128x128xbf16>
    %cst_35 = arith.constant dense<0.000000e+00> : vector<16x128xf32>
    %77 = tpu.matmul %50, %76, %cst_35 {dimension_numbers = #tpu.dot_dimension_numbers<[1], [0], [0], [1], [0, 0, 1, 1], [], []>} : vector<16x128xbf16>, vector<128x128xbf16>, vector<16x128xf32> -> vector<16x128xf32>
    %c0_36 = arith.constant 0 : index
    %c0_37 = arith.constant 0 : index
    %78 = vector.load %arg11[%c0_36, %c0_37] : memref<1x128xf32, #tpu.memory_space<vmem>>, vector<1x128xf32>
    %79 = vector.broadcast %78 : vector<1x128xf32> to vector<16x128xf32>
    %80 = arith.addf %77, %79 : vector<16x128xf32>
    %c0_38 = arith.constant 0 : index
    %c0_39 = arith.constant 0 : index
    %81 = vector.load %arg10[%c0_38, %c0_39] : memref<128x128xbf16, #tpu.memory_space<vmem>>, vector<128x128xbf16>
    %cst_40 = arith.constant dense<0.000000e+00> : vector<16x128xf32>
    %82 = tpu.matmul %51, %81, %cst_40 {dimension_numbers = #tpu.dot_dimension_numbers<[1], [0], [0], [1], [0, 0, 1, 1], [], []>} : vector<16x128xbf16>, vector<128x128xbf16>, vector<16x128xf32> -> vector<16x128xf32>
    %c0_41 = arith.constant 0 : index
    %c0_42 = arith.constant 0 : index
    %83 = vector.load %arg12[%c0_41, %c0_42] : memref<1x128xf32, #tpu.memory_space<vmem>>, vector<1x128xf32>
    %84 = vector.broadcast %83 : vector<1x128xf32> to vector<16x128xf32>
    %85 = arith.addf %82, %84 : vector<16x128xf32>
    %86 = arith.mulf %66, %85 : vector<16x128xf32>
    %87 = arith.addf %80, %86 : vector<16x128xf32>
    %88 = math.tanh %87 : vector<16x128xf32>
    %cst_43 = arith.constant 1.000000e+00 : f32
    %89 = vector.broadcast %cst_43 : f32 to vector<16x128xf32>
    %90 = arith.subf %89, %75 : vector<16x128xf32>
    %91 = arith.mulf %90, %88 : vector<16x128xf32>
    %92 = arith.mulf %75, %0 : vector<16x128xf32>
    %93 = arith.addf %91, %92 : vector<16x128xf32>
    %94 = arith.truncf %93 : vector<16x128xf32> to vector<16x128xbf16>
    %95 = arith.truncf %93 : vector<16x128xf32> to vector<16x128xbf16>
    %96 = tpu.concatenate %94, %95 in 1 : vector<16x128xbf16>, vector<16x128xbf16> -> vector<16x256xbf16>
    %c0_44 = arith.constant 0 : index
    %c0_45 = arith.constant 0 : index
    %97 = vector.load %arg13[%c0_44, %c0_45] : memref<256x256xbf16, #tpu.memory_space<vmem>>, vector<256x256xbf16>
    %cst_46 = arith.constant dense<0.000000e+00> : vector<16x256xf32>
    %98 = tpu.matmul %96, %97, %cst_46 {dimension_numbers = #tpu.dot_dimension_numbers<[1], [0], [0], [1], [0, 0, 1, 1], [], []>} : vector<16x256xbf16>, vector<256x256xbf16>, vector<16x256xf32> -> vector<16x256xf32>
    %c0_47 = arith.constant 0 : index
    %c0_48 = arith.constant 0 : index
    %99 = vector.load %arg14[%c0_47, %c0_48] : memref<1x256xf32, #tpu.memory_space<vmem>>, vector<1x256xf32>
    %100 = vector.broadcast %99 : vector<1x256xf32> to vector<16x256xf32>
    %101 = arith.addf %98, %100 : vector<16x256xf32>
    %102 = vector.extract_strided_slice %101 {offsets = [0, 0], sizes = [16, 128], strides = [1, 1]} : vector<16x256xf32> to vector<16x128xf32>
    %cst_49 = arith.constant -6.000000e+01 : f32
    %103 = vector.broadcast %cst_49 : f32 to vector<16x128xf32>
    %104 = arith.maximumf %102, %103 : vector<16x128xf32>
    %cst_50 = arith.constant 0.000000e+00 : f32
    %105 = vector.broadcast %cst_50 : f32 to vector<16x128xf32>
    %106 = arith.subf %105, %104 : vector<16x128xf32>
    %107 = math.exp %106 : vector<16x128xf32>
    %cst_51 = arith.constant 1.000000e+00 : f32
    %108 = vector.broadcast %cst_51 : f32 to vector<16x128xf32>
    %109 = arith.addf %108, %107 : vector<16x128xf32>
    %110 = tpu.reciprocal %109 {approx = true} : vector<16x128xf32> -> vector<16x128xf32>
    %111 = vector.extract_strided_slice %101 {offsets = [0, 128], sizes = [16, 128], strides = [1, 1]} : vector<16x256xf32> to vector<16x128xf32>
    %cst_52 = arith.constant -6.000000e+01 : f32
    %112 = vector.broadcast %cst_52 : f32 to vector<16x128xf32>
    %113 = arith.maximumf %111, %112 : vector<16x128xf32>
    %cst_53 = arith.constant 0.000000e+00 : f32
    %114 = vector.broadcast %cst_53 : f32 to vector<16x128xf32>
    %115 = arith.subf %114, %113 : vector<16x128xf32>
    %116 = math.exp %115 : vector<16x128xf32>
    %cst_54 = arith.constant 1.000000e+00 : f32
    %117 = vector.broadcast %cst_54 : f32 to vector<16x128xf32>
    %118 = arith.addf %117, %116 : vector<16x128xf32>
    %119 = tpu.reciprocal %118 {approx = true} : vector<16x128xf32> -> vector<16x128xf32>
    %c0_55 = arith.constant 0 : index
    %c0_56 = arith.constant 0 : index
    %120 = vector.load %arg15[%c0_55, %c0_56] : memref<128x128xbf16, #tpu.memory_space<vmem>>, vector<128x128xbf16>
    %cst_57 = arith.constant dense<0.000000e+00> : vector<16x128xf32>
    %121 = tpu.matmul %94, %120, %cst_57 {dimension_numbers = #tpu.dot_dimension_numbers<[1], [0], [0], [1], [0, 0, 1, 1], [], []>} : vector<16x128xbf16>, vector<128x128xbf16>, vector<16x128xf32> -> vector<16x128xf32>
    %c0_58 = arith.constant 0 : index
    %c0_59 = arith.constant 0 : index
    %122 = vector.load %arg17[%c0_58, %c0_59] : memref<1x128xf32, #tpu.memory_space<vmem>>, vector<1x128xf32>
    %123 = vector.broadcast %122 : vector<1x128xf32> to vector<16x128xf32>
    %124 = arith.addf %121, %123 : vector<16x128xf32>
    %c0_60 = arith.constant 0 : index
    %c0_61 = arith.constant 0 : index
    %125 = vector.load %arg16[%c0_60, %c0_61] : memref<128x128xbf16, #tpu.memory_space<vmem>>, vector<128x128xbf16>
    %cst_62 = arith.constant dense<0.000000e+00> : vector<16x128xf32>
    %126 = tpu.matmul %95, %125, %cst_62 {dimension_numbers = #tpu.dot_dimension_numbers<[1], [0], [0], [1], [0, 0, 1, 1], [], []>} : vector<16x128xbf16>, vector<128x128xbf16>, vector<16x128xf32> -> vector<16x128xf32>
    %c0_63 = arith.constant 0 : index
    %c0_64 = arith.constant 0 : index
    %127 = vector.load %arg18[%c0_63, %c0_64] : memref<1x128xf32, #tpu.memory_space<vmem>>, vector<1x128xf32>
    %128 = vector.broadcast %127 : vector<1x128xf32> to vector<16x128xf32>
    %129 = arith.addf %126, %128 : vector<16x128xf32>
    %130 = arith.mulf %110, %129 : vector<16x128xf32>
    %131 = arith.addf %124, %130 : vector<16x128xf32>
    %132 = math.tanh %131 : vector<16x128xf32>
    %cst_65 = arith.constant 1.000000e+00 : f32
    %133 = vector.broadcast %cst_65 : f32 to vector<16x128xf32>
    %134 = arith.subf %133, %119 : vector<16x128xf32>
    %135 = arith.mulf %134, %132 : vector<16x128xf32>
    %136 = arith.mulf %119, %93 : vector<16x128xf32>
    %137 = arith.addf %135, %136 : vector<16x128xf32>
    %c0_66 = arith.constant 0 : index
    %c0_67 = arith.constant 0 : index
    %138 = vector.load %arg19[%c0_66, %c0_67] : memref<1x128xf32, #tpu.memory_space<vmem>>, vector<1x128xf32>
    %139 = arith.mulf %137, %137 : vector<16x128xf32>
    %cst_68 = arith.constant dense<0.000000e+00> : vector<16xf32>
    %140 = vector.multi_reduction <add>, %139, %cst_68 [1] : vector<16x128xf32> to vector<16xf32>
    %141 = vector.shape_cast %140 : vector<16xf32> to vector<16x1xf32>
    %142 = math.sqrt %141 : vector<16x1xf32>
    %cst_69 = arith.constant 0.0883883461 : f32
    %143 = vector.broadcast %cst_69 : f32 to vector<16x1xf32>
    %144 = arith.mulf %142, %143 : vector<16x1xf32>
    %cst_70 = arith.constant 9.99999993E-9 : f32
    %145 = vector.broadcast %cst_70 : f32 to vector<16x1xf32>
    %146 = arith.maximumf %144, %145 : vector<16x1xf32>
    %147 = vector.broadcast %146 : vector<16x1xf32> to vector<16x128xf32>
    %148 = arith.divf %137, %147 : vector<16x128xf32>
    %149 = vector.broadcast %138 : vector<1x128xf32> to vector<16x128xf32>
    %150 = arith.mulf %148, %149 : vector<16x128xf32>
    %151 = arith.truncf %150 : vector<16x128xf32> to vector<16x128xbf16>
    %152 = arith.truncf %137 : vector<16x128xf32> to vector<16x128xbf16>
    %153 = tpu.concatenate %151, %152 in 1 : vector<16x128xbf16>, vector<16x128xbf16> -> vector<16x256xbf16>
    %c0_71 = arith.constant 0 : index
    %c0_72 = arith.constant 0 : index
    %154 = vector.load %arg20[%c0_71, %c0_72] : memref<256x256xbf16, #tpu.memory_space<vmem>>, vector<256x256xbf16>
    %cst_73 = arith.constant dense<0.000000e+00> : vector<16x256xf32>
    %155 = tpu.matmul %153, %154, %cst_73 {dimension_numbers = #tpu.dot_dimension_numbers<[1], [0], [0], [1], [0, 0, 1, 1], [], []>} : vector<16x256xbf16>, vector<256x256xbf16>, vector<16x256xf32> -> vector<16x256xf32>
    %c0_74 = arith.constant 0 : index
    %c0_75 = arith.constant 0 : index
    %156 = vector.load %arg21[%c0_74, %c0_75] : memref<1x256xf32, #tpu.memory_space<vmem>>, vector<1x256xf32>
    %157 = vector.broadcast %156 : vector<1x256xf32> to vector<16x256xf32>
    %158 = arith.addf %155, %157 : vector<16x256xf32>
    %159 = vector.extract_strided_slice %158 {offsets = [0, 0], sizes = [16, 128], strides = [1, 1]} : vector<16x256xf32> to vector<16x128xf32>
    %cst_76 = arith.constant -6.000000e+01 : f32
    %160 = vector.broadcast %cst_76 : f32 to vector<16x128xf32>
    %161 = arith.maximumf %159, %160 : vector<16x128xf32>
    %cst_77 = arith.constant 0.000000e+00 : f32
    %162 = vector.broadcast %cst_77 : f32 to vector<16x128xf32>
    %163 = arith.subf %162, %161 : vector<16x128xf32>
    %164 = math.exp %163 : vector<16x128xf32>
    %cst_78 = arith.constant 1.000000e+00 : f32
    %165 = vector.broadcast %cst_78 : f32 to vector<16x128xf32>
    %166 = arith.addf %165, %164 : vector<16x128xf32>
    %167 = tpu.reciprocal %166 {approx = true} : vector<16x128xf32> -> vector<16x128xf32>
    %168 = vector.extract_strided_slice %158 {offsets = [0, 128], sizes = [16, 128], strides = [1, 1]} : vector<16x256xf32> to vector<16x128xf32>
    %cst_79 = arith.constant -6.000000e+01 : f32
    %169 = vector.broadcast %cst_79 : f32 to vector<16x128xf32>
    %170 = arith.maximumf %168, %169 : vector<16x128xf32>
    %cst_80 = arith.constant 0.000000e+00 : f32
    %171 = vector.broadcast %cst_80 : f32 to vector<16x128xf32>
    %172 = arith.subf %171, %170 : vector<16x128xf32>
    %173 = math.exp %172 : vector<16x128xf32>
    %cst_81 = arith.constant 1.000000e+00 : f32
    %174 = vector.broadcast %cst_81 : f32 to vector<16x128xf32>
    %175 = arith.addf %174, %173 : vector<16x128xf32>
    %176 = tpu.reciprocal %175 {approx = true} : vector<16x128xf32> -> vector<16x128xf32>
    %c0_82 = arith.constant 0 : index
    %c0_83 = arith.constant 0 : index
    %177 = vector.load %arg22[%c0_82, %c0_83] : memref<128x128xbf16, #tpu.memory_space<vmem>>, vector<128x128xbf16>
    %cst_84 = arith.constant dense<0.000000e+00> : vector<16x128xf32>
    %178 = tpu.matmul %151, %177, %cst_84 {dimension_numbers = #tpu.dot_dimension_numbers<[1], [0], [0], [1], [0, 0, 1, 1], [], []>} : vector<16x128xbf16>, vector<128x128xbf16>, vector<16x128xf32> -> vector<16x128xf32>
    %c0_85 = arith.constant 0 : index
    %c0_86 = arith.constant 0 : index
    %179 = vector.load %arg24[%c0_85, %c0_86] : memref<1x128xf32, #tpu.memory_space<vmem>>, vector<1x128xf32>
    %180 = vector.broadcast %179 : vector<1x128xf32> to vector<16x128xf32>
    %181 = arith.addf %178, %180 : vector<16x128xf32>
    %c0_87 = arith.constant 0 : index
    %c0_88 = arith.constant 0 : index
    %182 = vector.load %arg23[%c0_87, %c0_88] : memref<128x128xbf16, #tpu.memory_space<vmem>>, vector<128x128xbf16>
    %cst_89 = arith.constant dense<0.000000e+00> : vector<16x128xf32>
    %183 = tpu.matmul %152, %182, %cst_89 {dimension_numbers = #tpu.dot_dimension_numbers<[1], [0], [0], [1], [0, 0, 1, 1], [], []>} : vector<16x128xbf16>, vector<128x128xbf16>, vector<16x128xf32> -> vector<16x128xf32>
    %c0_90 = arith.constant 0 : index
    %c0_91 = arith.constant 0 : index
    %184 = vector.load %arg25[%c0_90, %c0_91] : memref<1x128xf32, #tpu.memory_space<vmem>>, vector<1x128xf32>
    %185 = vector.broadcast %184 : vector<1x128xf32> to vector<16x128xf32>
    %186 = arith.addf %183, %185 : vector<16x128xf32>
    %187 = arith.mulf %167, %186 : vector<16x128xf32>
    %188 = arith.addf %181, %187 : vector<16x128xf32>
    %189 = math.tanh %188 : vector<16x128xf32>
    %cst_92 = arith.constant 1.000000e+00 : f32
    %190 = vector.broadcast %cst_92 : f32 to vector<16x128xf32>
    %191 = arith.subf %190, %176 : vector<16x128xf32>
    %192 = arith.mulf %191, %189 : vector<16x128xf32>
    %193 = arith.mulf %176, %137 : vector<16x128xf32>
    %194 = arith.addf %192, %193 : vector<16x128xf32>
    %c0_93 = arith.constant 0 : index
    %c0_94 = arith.constant 0 : index
    %195 = vector.load %arg26[%c0_93, %c0_94] : memref<16x128xf32, #tpu.memory_space<vmem>>, vector<16x128xf32>
    tpu.vector_store %arg26[%c0_93, %c0_94], %194 {strides = array<i32>} : memref<16x128xf32, #tpu.memory_space<vmem>>, vector<16x128xf32>,
    return
  }
  func.func @transform_0(%arg0: i32) -> (i32, i32) {
    %c0_i32 = arith.constant 0 : i32
    %c0_i32_0 = arith.constant 0 : i32
    return %arg0, %c0_i32 : i32, i32
  }
  func.func @transform_1(%arg0: i32) -> (i32, i32) {
    %c0_i32 = arith.constant 0 : i32
    %c0_i32_0 = arith.constant 0 : i32
    %c0_i32_1 = arith.constant 0 : i32
    return %c0_i32, %c0_i32_0 : i32, i32
  }
  func.func @transform_2(%arg0: i32) -> (i32, i32) {
    %c0_i32 = arith.constant 0 : i32
    %c0_i32_0 = arith.constant 0 : i32
    %c0_i32_1 = arith.constant 0 : i32
    return %c0_i32, %c0_i32_0 : i32, i32
  }
  func.func @transform_3(%arg0: i32) -> (i32, i32) {
    %c0_i32 = arith.constant 0 : i32
    %c0_i32_0 = arith.constant 0 : i32
    %c0_i32_1 = arith.constant 0 : i32
    return %c0_i32, %c0_i32_0 : i32, i32
  }
  func.func @transform_4(%arg0: i32) -> (i32, i32) {
    %c0_i32 = arith.constant 0 : i32
    %c0_i32_0 = arith.constant 0 : i32
    %c0_i32_1 = arith.constant 0 : i32
    return %c0_i32, %c0_i32_0 : i32, i32
  }
  func.func @transform_5(%arg0: i32) -> (i32, i32) {
    %c0_i32 = arith.constant 0 : i32
    %c0_i32_0 = arith.constant 0 : i32
    %c0_i32_1 = arith.constant 0 : i32
    return %c0_i32, %c0_i32_0 : i32, i32
  }
  func.func @transform_6(%arg0: i32) -> (i32, i32) {
    %c0_i32 = arith.constant 0 : i32
    %c0_i32_0 = arith.constant 0 : i32
    %c0_i32_1 = arith.constant 0 : i32
    return %c0_i32, %c0_i32_0 : i32, i32
  }
  func.func @transform_7(%arg0: i32) -> (i32, i32) {
    %c0_i32 = arith.constant 0 : i32
    %c0_i32_0 = arith.constant 0 : i32
    %c0_i32_1 = arith.constant 0 : i32
    return %c0_i32, %c0_i32_0 : i32, i32
  }
  func.func @transform_8(%arg0: i32) -> (i32, i32) {
    %c0_i32 = arith.constant 0 : i32
    %c0_i32_0 = arith.constant 0 : i32
    %c0_i32_1 = arith.constant 0 : i32
    return %c0_i32, %c0_i32_0 : i32, i32
  }
  func.func @transform_9(%arg0: i32) -> (i32, i32) {
    %c0_i32 = arith.constant 0 : i32
    %c0_i32_0 = arith.constant 0 : i32
    %c0_i32_1 = arith.constant 0 : i32
    return %c0_i32, %c0_i32_0 : i32, i32
  }
  func.func @transform_10(%arg0: i32) -> (i32, i32) {
    %c0_i32 = arith.constant 0 : i32
    %c0_i32_0 = arith.constant 0 : i32
    %c0_i32_1 = arith.constant 0 : i32
    return %c0_i32, %c0_i32_0 : i32, i32
  }
  func.func @transform_11(%arg0: i32) -> (i32, i32) {
    %c0_i32 = arith.constant 0 : i32
    %c0_i32_0 = arith.constant 0 : i32
    %c0_i32_1 = arith.constant 0 : i32
    return %c0_i32, %c0_i32_0 : i32, i32
  }
  func.func @transform_12(%arg0: i32) -> (i32, i32) {
    %c0_i32 = arith.constant 0 : i32
    %c0_i32_0 = arith.constant 0 : i32
    %c0_i32_1 = arith.constant 0 : i32
    return %c0_i32, %c0_i32_0 : i32, i32
  }
  func.func @transform_13(%arg0: i32) -> (i32, i32) {
    %c0_i32 = arith.constant 0 : i32
    %c0_i32_0 = arith.constant 0 : i32
    %c0_i32_1 = arith.constant 0 : i32
    return %c0_i32, %c0_i32_0 : i32, i32
  }
  func.func @transform_14(%arg0: i32) -> (i32, i32) {
    %c0_i32 = arith.constant 0 : i32
    %c0_i32_0 = arith.constant 0 : i32
    %c0_i32_1 = arith.constant 0 : i32
    return %c0_i32, %c0_i32_0 : i32, i32
  }
  func.func @transform_15(%arg0: i32) -> (i32, i32) {
    %c0_i32 = arith.constant 0 : i32
    %c0_i32_0 = arith.constant 0 : i32
    %c0_i32_1 = arith.constant 0 : i32
    return %c0_i32, %c0_i32_0 : i32, i32
  }
  func.func @transform_16(%arg0: i32) -> (i32, i32) {
    %c0_i32 = arith.constant 0 : i32
    %c0_i32_0 = arith.constant 0 : i32
    %c0_i32_1 = arith.constant 0 : i32
    return %c0_i32, %c0_i32_0 : i32, i32
  }
  func.func @transform_17(%arg0: i32) -> (i32, i32) {
    %c0_i32 = arith.constant 0 : i32
    %c0_i32_0 = arith.constant 0 : i32
    %c0_i32_1 = arith.constant 0 : i32
    return %c0_i32, %c0_i32_0 : i32, i32
  }
  func.func @transform_18(%arg0: i32) -> (i32, i32) {
    %c0_i32 = arith.constant 0 : i32
    %c0_i32_0 = arith.constant 0 : i32
    %c0_i32_1 = arith.constant 0 : i32
    return %c0_i32, %c0_i32_0 : i32, i32
  }
  func.func @transform_19(%arg0: i32) -> (i32, i32) {
    %c0_i32 = arith.constant 0 : i32
    %c0_i32_0 = arith.constant 0 : i32
    %c0_i32_1 = arith.constant 0 : i32
    return %c0_i32, %c0_i32_0 : i32, i32
  }
  func.func @transform_20(%arg0: i32) -> (i32, i32) {
    %c0_i32 = arith.constant 0 : i32
    %c0_i32_0 = arith.constant 0 : i32
    %c0_i32_1 = arith.constant 0 : i32
    return %c0_i32, %c0_i32_0 : i32, i32
  }
  func.func @transform_21(%arg0: i32) -> (i32, i32) {
    %c0_i32 = arith.constant 0 : i32
    %c0_i32_0 = arith.constant 0 : i32
    %c0_i32_1 = arith.constant 0 : i32
    return %c0_i32, %c0_i32_0 : i32, i32
  }
  func.func @transform_22(%arg0: i32) -> (i32, i32) {
    %c0_i32 = arith.constant 0 : i32
    %c0_i32_0 = arith.constant 0 : i32
    %c0_i32_1 = arith.constant 0 : i32
    return %c0_i32, %c0_i32_0 : i32, i32
  }
  func.func @transform_23(%arg0: i32) -> (i32, i32) {
    %c0_i32 = arith.constant 0 : i32
    %c0_i32_0 = arith.constant 0 : i32
    %c0_i32_1 = arith.constant 0 : i32
    return %c0_i32, %c0_i32_0 : i32, i32
  }
  func.func @transform_24(%arg0: i32) -> (i32, i32) {
    %c0_i32 = arith.constant 0 : i32
    %c0_i32_0 = arith.constant 0 : i32
    %c0_i32_1 = arith.constant 0 : i32
    return %c0_i32, %c0_i32_0 : i32, i32
  }
  func.func @transform_25(%arg0: i32) -> (i32, i32) {
    %c0_i32 = arith.constant 0 : i32
    %c0_i32_0 = arith.constant 0 : i32
    return %arg0, %c0_i32 : i32, i32
  }
}

</mosaic_0001>

<llo_original>
// kernel: transformer_block.1
$region0: #{transformer_block.1}
  #allocation0 [shape = 'u32[]', space=smem, size = 0x4, offset = 0x4, fixed_abs, tag = 'smem constant byte address 0x4 - core index']
  #allocation1 [shape = 'u32[144,128]{1,0:T(1,128)}', space=vmem, size = 0x12000, scoped, tag = 'internal scratch']
  %s0 = inlined_call_operand.vmem [shape: f32[16,128], index: 0, kind: input, shape index: {}]
  %s1 = inlined_call_operand.vmem [shape: f32[1,128], index: 1, kind: input, shape index: {}]
  %s2 = inlined_call_operand.vmem [shape: bf16[128,512], index: 2, kind: input, shape index: {}]
  %s3 = inlined_call_operand.vmem [shape: f32[1,512], index: 3, kind: input, shape index: {}]
  %s4 = inlined_call_operand.vmem [shape: bf16[256,128], index: 4, kind: input, shape index: {}]
  %s5 = inlined_call_operand.vmem [shape: f32[1,128], index: 5, kind: input, shape index: {}]
  %s6 = inlined_call_operand.vmem [shape: bf16[256,256], index: 6, kind: input, shape index: {}]
  %s7 = inlined_call_operand.vmem [shape: f32[1,256], index: 7, kind: input, shape index: {}]
  %s8 = inlined_call_operand.vmem [shape: bf16[128,128], index: 8, kind: input, shape index: {}]
  %s9 = inlined_call_operand.vmem [shape: bf16[128,128], index: 9, kind: input, shape index: {}]
  %s10 = inlined_call_operand.vmem [shape: f32[1,128], index: 10, kind: input, shape index: {}]
  %s11 = inlined_call_operand.vmem [shape: f32[1,128], index: 11, kind: input, shape index: {}]
  %s12 = inlined_call_operand.vmem [shape: bf16[256,256], index: 12, kind: input, shape index: {}]
  %s13 = inlined_call_operand.vmem [shape: f32[1,256], index: 13, kind: input, shape index: {}]
  %s14 = inlined_call_operand.vmem [shape: bf16[128,128], index: 14, kind: input, shape index: {}]
  %s15 = inlined_call_operand.vmem [shape: bf16[128,128], index: 15, kind: input, shape index: {}]
  %s16 = inlined_call_operand.vmem [shape: f32[1,128], index: 16, kind: input, shape index: {}]
  %s17 = inlined_call_operand.vmem [shape: f32[1,128], index: 17, kind: input, shape index: {}]
  %s18 = inlined_call_operand.vmem [shape: f32[1,128], index: 18, kind: input, shape index: {}]
  %s19 = inlined_call_operand.vmem [shape: bf16[256,256], index: 19, kind: input, shape index: {}]
  %s20 = inlined_call_operand.vmem [shape: f32[1,256], index: 20, kind: input, shape index: {}]
  %s21 = inlined_call_operand.vmem [shape: bf16[128,128], index: 21, kind: input, shape index: {}]
  %s22 = inlined_call_operand.vmem [shape: bf16[128,128], index: 22, kind: input, shape index: {}]
  %s23 = inlined_call_operand.vmem [shape: f32[1,128], index: 23, kind: input, shape index: {}]
  %s24 = inlined_call_operand.vmem [shape: f32[1,128], index: 24, kind: input, shape index: {}]
  %s25 = inlined_call_operand.hbm [shape: f32[16,128], index: 25, kind: output, shape index: {}]
  %s26 = sld [smem:[#allocation0]]
  $region110: #{transformer_block.1} parent=0
    _
  %s28 = ssub.s32 1, %s26
  %s29 = scalar_select 0, %s28, %s26
  $region1: #{transformer_block.1} parent=0
    #allocation2 [shape = 'u8[8192]{0}', space=vmem, size = 0x2000, scoped, tag = 'output window, operand 0, single buffered']
    #allocation3 [shape = 's32[1]{0}', space=sflag, size = 0x4, scoped, tag = 'scoped memory for transformer_block.1']
    %30 = vsyncpa [#allocation3], 0
    // Predicated region
    $region2: #{transformer_block.1} parent=1 // pred_check
      _
    $region3: #{transformer_block.1} parent=1 // pred_check_branch
      %32 = sbr.rel (0) target = $region5
    $region4: #{transformer_block.1} parent=1 // pred_region
      _
    $region5: #{transformer_block.1} parent=1 // pred_fallthru
      _
    // Predicated region
    $region6: #{transformer_block.1} parent=1 // pred_check
      _
    $region7: #{transformer_block.1} parent=1 // pred_check_branch
      %34 = sbr.rel (0) target = $region9
    $region8: #{transformer_block.1} parent=1 // pred_region
      _
    $region9: #{transformer_block.1} parent=1 // pred_fallthru
      _
    // Predicated region
    $region10: #{transformer_block.1} parent=1 // pred_check
      _
    $region11: #{transformer_block.1} parent=1 // pred_check_branch
      %36 = sbr.rel (0) target = $region13
    $region12: #{transformer_block.1} parent=1 // pred_region
      _
    $region13: #{transformer_block.1} parent=1 // pred_fallthru
      _
    // Predicated region
    $region14: #{transformer_block.1} parent=1 // pred_check
      _
    $region15: #{transformer_block.1} parent=1 // pred_check_branch
      %38 = sbr.rel (0) target = $region17
    $region16: #{transformer_block.1} parent=1 // pred_region
      _
    $region17: #{transformer_block.1} parent=1 // pred_fallthru
      _
    // Predicated region
    $region18: #{transformer_block.1} parent=1 // pred_check
      _
    $region19: #{transformer_block.1} parent=1 // pred_check_branch
      %40 = sbr.rel (0) target = $region21
    $region20: #{transformer_block.1} parent=1 // pred_region
      _
    $region21: #{transformer_block.1} parent=1 // pred_fallthru
      _
    // Predicated region
    $region22: #{transformer_block.1} parent=1 // pred_check
      _
    $region23: #{transformer_block.1} parent=1 // pred_check_branch
      %42 = sbr.rel (0) target = $region25
    $region24: #{transformer_block.1} parent=1 // pred_region
      _
    $region25: #{transformer_block.1} parent=1 // pred_fallthru
      _
    // Predicated region
    $region26: #{transformer_block.1} parent=1 // pred_check
      _
    $region27: #{transformer_block.1} parent=1 // pred_check_branch
      %44 = sbr.rel (0) target = $region29
    $region28: #{transformer_block.1} parent=1 // pred_region
      _
    $region29: #{transformer_block.1} parent=1 // pred_fallthru
      _
    // Predicated region
    $region30: #{transformer_block.1} parent=1 // pred_check
      _
    $region31: #{transformer_block.1} parent=1 // pred_check_branch
      %46 = sbr.rel (0) target = $region33
    $region32: #{transformer_block.1} parent=1 // pred_region
      _
    $region33: #{transformer_block.1} parent=1 // pred_fallthru
      _
    // Predicated region
    $region34: #{transformer_block.1} parent=1 // pred_check
      _
    $region35: #{transformer_block.1} parent=1 // pred_check_branch
      %48 = sbr.rel (0) target = $region37
    $region36: #{transformer_block.1} parent=1 // pred_region
      _
    $region37: #{transformer_block.1} parent=1 // pred_fallthru
      _
    // Predicated region
    $region38: #{transformer_block.1} parent=1 // pred_check
      _
    $region39: #{transformer_block.1} parent=1 // pred_check_branch
      %50 = sbr.rel (0) target = $region41
    $region40: #{transformer_block.1} parent=1 // pred_region
      _
    $region41: #{transformer_block.1} parent=1 // pred_fallthru
      _
    // Predicated region
    $region42: #{transformer_block.1} parent=1 // pred_check
      _
    $region43: #{transformer_block.1} parent=1 // pred_check_branch
      %52 = sbr.rel (0) target = $region45
    $region44: #{transformer_block.1} parent=1 // pred_region
      _
    $region45: #{transformer_block.1} parent=1 // pred_fallthru
      _
    // Predicated region
    $region46: #{transformer_block.1} parent=1 // pred_check
      _
    $region47: #{transformer_block.1} parent=1 // pred_check_branch
      %54 = sbr.rel (0) target = $region49
    $region48: #{transformer_block.1} parent=1 // pred_region
      _
    $region49: #{transformer_block.1} parent=1 // pred_fallthru
      _
    // Predicated region
    $region50: #{transformer_block.1} parent=1 // pred_check
      _
    $region51: #{transformer_block.1} parent=1 // pred_check_branch
      %56 = sbr.rel (0) target = $region53
    $region52: #{transformer_block.1} parent=1 // pred_region
      _
    $region53: #{transformer_block.1} parent=1 // pred_fallthru
      _
    // Predicated region
    $region54: #{transformer_block.1} parent=1 // pred_check
      _
    $region55: #{transformer_block.1} parent=1 // pred_check_branch
      %58 = sbr.rel (0) target = $region57
    $region56: #{transformer_block.1} parent=1 // pred_region
      _
    $region57: #{transformer_block.1} parent=1 // pred_fallthru
      _
    // Predicated region
    $region58: #{transformer_block.1} parent=1 // pred_check
      _
    $region59: #{transformer_block.1} parent=1 // pred_check_branch
      %60 = sbr.rel (0) target = $region61
    $region60: #{transformer_block.1} parent=1 // pred_region
      _
    $region61: #{transformer_block.1} parent=1 // pred_fallthru
      _
    // Predicated region
    $region62: #{transformer_block.1} parent=1 // pred_check
      _
    $region63: #{transformer_block.1} parent=1 // pred_check_branch
      %62 = sbr.rel (0) target = $region65
    $region64: #{transformer_block.1} parent=1 // pred_region
      _
    $region65: #{transformer_block.1} parent=1 // pred_fallthru
      _
    // Predicated region
    $region66: #{transformer_block.1} parent=1 // pred_check
      _
    $region67: #{transformer_block.1} parent=1 // pred_check_branch
      %64 = sbr.rel (0) target = $region69
    $region68: #{transformer_block.1} parent=1 // pred_region
      _
    $region69: #{transformer_block.1} parent=1 // pred_fallthru
      _
    // Predicated region
    $region70: #{transformer_block.1} parent=1 // pred_check
      _
    $region71: #{transformer_block.1} parent=1 // pred_check_branch
      %66 = sbr.rel (0) target = $region73
    $region72: #{transformer_block.1} parent=1 // pred_region
      _
    $region73: #{transformer_block.1} parent=1 // pred_fallthru
      _
    // Predicated region
    $region74: #{transformer_block.1} parent=1 // pred_check
      _
    $region75: #{transformer_block.1} parent=1 // pred_check_branch
      %68 = sbr.rel (0) target = $region77
    $region76: #{transformer_block.1} parent=1 // pred_region
      _
    $region77: #{transformer_block.1} parent=1 // pred_fallthru
      _
    // Predicated region
    $region78: #{transformer_block.1} parent=1 // pred_check
      _
    $region79: #{transformer_block.1} parent=1 // pred_check_branch
      %70 = sbr.rel (0) target = $region81
    $region80: #{transformer_block.1} parent=1 // pred_region
      _
    $region81: #{transformer_block.1} parent=1 // pred_fallthru
      _
    // Predicated region
    $region82: #{transformer_block.1} parent=1 // pred_check
      _
    $region83: #{transformer_block.1} parent=1 // pred_check_branch
      %72 = sbr.rel (0) target = $region85
    $region84: #{transformer_block.1} parent=1 // pred_region
      _
    $region85: #{transformer_block.1} parent=1 // pred_fallthru
      _
    // Predicated region
    $region86: #{transformer_block.1} parent=1 // pred_check
      _
    $region87: #{transformer_block.1} parent=1 // pred_check_branch
      %74 = sbr.rel (0) target = $region89
    $region88: #{transformer_block.1} parent=1 // pred_region
      _
    $region89: #{transformer_block.1} parent=1 // pred_fallthru
      _
    // Predicated region
    $region90: #{transformer_block.1} parent=1 // pred_check
      _
    $region91: #{transformer_block.1} parent=1 // pred_check_branch
      %76 = sbr.rel (0) target = $region93
    $region92: #{transformer_block.1} parent=1 // pred_region
      _
    $region93: #{transformer_block.1} parent=1 // pred_fallthru
      _
    // Predicated region
    $region94: #{transformer_block.1} parent=1 // pred_check
      _
    $region95: #{transformer_block.1} parent=1 // pred_check_branch
      %78 = sbr.rel (0) target = $region97
    $region96: #{transformer_block.1} parent=1 // pred_region
      _
    $region97: #{transformer_block.1} parent=1 // pred_fallthru
      _
    // Predicated region
    $region98: #{transformer_block.1} parent=1 // pred_check
      _
    $region99: #{transformer_block.1} parent=1 // pred_check_branch
      %80 = sbr.rel (0) target = $region101
    $region100: #{transformer_block.1} parent=1 // pred_region
      _
    $region101: #{transformer_block.1} parent=1 // pred_fallthru
      _
    %v82 = vld [vmem:[%s0] sm:$0xff]
    %v83 = vld [vmem:[%s0 + $0x8] sm:$0xff]
    %v84 = vld [vmem:[%s1] sm:$0x1]
    %v85 = vmul.f32 %v82, %v82
    %v86 = vmul.f32 %v83, %v83
    %87 = vadd.xlane.f32.xlu0 %v85
    %v88 = vpop.xlane.xlu0 %87
    %89 = vadd.xlane.f32.xlu0 %v86
    %v90 = vpop.xlane.xlu0 %89
    %v91 = vrsqrt.pop %v88
    %v92 = vmul.f32 %v88, %v91
    %vm93 = vcmp.eq.f32.partialorder %v88, inf
    %v94 = vsel %vm93, %v88, %v92
    %vm95 = vcmp.eq.f32.partialorder %v88, 0.0
    %v96 = vand.u32 %v88, 2147483648
    %v97 = vsel %vm95, %v96, %v94
    %v98 = vrsqrt.pop %v90
    %v99 = vmul.f32 %v90, %v98
    %vm100 = vcmp.eq.f32.partialorder %v90, inf
    %v101 = vsel %vm100, %v90, %v99
    %vm102 = vcmp.eq.f32.partialorder %v90, 0.0
    %v103 = vand.u32 %v90, 2147483648
    %v104 = vsel %vm102, %v103, %v101
    %v105 = vmul.f32 %v97, 0.088388346
    %v106 = vmul.f32 %v104, 0.088388346
    %v107 = vmax.f32 %v105, 1e-08
    %v108 = vmax.f32 %v106, 1e-08
    %v109 = vrcp.pop %v107
    %v110 = vmul.f32 %v82, %v109
    %v111 = vrcp.pop %v108
    %v112 = vmul.f32 %v83, %v111
    %v114 = vlaneseq
    %v115 = vshrl.u32 %v114, 7
    %v116 = vsub.s32 0, %v115
    %v117 = vrot.slane %v84, %v116
    %v119 = vmul.f32 %v110, %v117
    %v120 = vmul.f32 %v112, %v117
    %v121 = vpack.c.bf16 %v120, %v119
    %v122 = vld [vmem:[%s2] sm:$0xff]
    %v123 = vld [vmem:[%s2 + $0x8] sm:$0xff]
    %v124 = vld [vmem:[%s2 + $0x10] sm:$0xff]
    %v125 = vld [vmem:[%s2 + $0x18] sm:$0xff]
    %v126 = vld [vmem:[%s2 + $0x20] sm:$0xff]
    %v127 = vld [vmem:[%s2 + $0x28] sm:$0xff]
    %v128 = vld [vmem:[%s2 + $0x30] sm:$0xff]
    %v129 = vld [vmem:[%s2 + $0x38] sm:$0xff]
    %v130 = vld [vmem:[%s2 + $0x40] sm:$0xff]
    %v131 = vld [vmem:[%s2 + $0x48] sm:$0xff]
    %v132 = vld [vmem:[%s2 + $0x50] sm:$0xff]
    %v133 = vld [vmem:[%s2 + $0x58] sm:$0xff]
    %v134 = vld [vmem:[%s2 + $0x60] sm:$0xff]
    %v135 = vld [vmem:[%s2 + $0x68] sm:$0xff]
    %v136 = vld [vmem:[%s2 + $0x70] sm:$0xff]
    %v137 = vld [vmem:[%s2 + $0x78] sm:$0xff]
    %v138 = vld [vmem:[%s2 + $0x80] sm:$0xff]
    %v139 = vld [vmem:[%s2 + $0x88] sm:$0xff]
    %v140 = vld [vmem:[%s2 + $0x90] sm:$0xff]
    %v141 = vld [vmem:[%s2 + $0x98] sm:$0xff]
    %v142 = vld [vmem:[%s2 + $0xa0] sm:$0xff]
    %v143 = vld [vmem:[%s2 + $0xa8] sm:$0xff]
    %v144 = vld [vmem:[%s2 + $0xb0] sm:$0xff]
    %v145 = vld [vmem:[%s2 + $0xb8] sm:$0xff]
    %v146 = vld [vmem:[%s2 + $0xc0] sm:$0xff]
    %v147 = vld [vmem:[%s2 + $0xc8] sm:$0xff]
    %v148 = vld [vmem:[%s2 + $0xd0] sm:$0xff]
    %v149 = vld [vmem:[%s2 + $0xd8] sm:$0xff]
    %v150 = vld [vmem:[%s2 + $0xe0] sm:$0xff]
    %v151 = vld [vmem:[%s2 + $0xe8] sm:$0xff]
    %v152 = vld [vmem:[%s2 + $0xf0] sm:$0xff]
    %v153 = vld [vmem:[%s2 + $0xf8] sm:$0xff]
    %v154 = vld [vmem:[%s3] sm:$0xf]
    %v156 = vlaneseq
    %v157 = vshrl.u32 %v156, 7
    %v158 = vsub.s32 0, %v157
    %v159 = vrot.slane %v154, %v158
    %v160 = vlaneseq
    %v161 = vshrl.u32 %v160, 7
    %v162 = vsub.s32 1, %v161
    %v163 = vrot.slane %v154, %v162
    %v164 = vlaneseq
    %v165 = vshrl.u32 %v164, 7
    %v166 = vsub.s32 2, %v165
    %v167 = vrot.slane %v154, %v166
    %v168 = vlaneseq
    %v169 = vshrl.u32 %v168, 7
    %v170 = vsub.s32 3, %v169
    %v171 = vrot.slane %v154, %v170
    %v208 = vunpack.c.l.b16 %v122
    %v209 = vunpack.c.h.b16 %v122
    %v210 = vunpack.c.l.b16 %v123
    %v211 = vunpack.c.h.b16 %v123
    %v212 = vunpack.c.l.b16 %v124
    %v213 = vunpack.c.h.b16 %v124
    %v214 = vunpack.c.l.b16 %v125
    %v215 = vunpack.c.h.b16 %v125
    %v216 = vunpack.c.l.b16 %v126
    %v217 = vunpack.c.h.b16 %v126
    %v218 = vunpack.c.l.b16 %v127
    %v219 = vunpack.c.h.b16 %v127
    %v220 = vunpack.c.l.b16 %v128
    %v221 = vunpack.c.h.b16 %v128
    %v222 = vunpack.c.l.b16 %v129
    %v223 = vunpack.c.h.b16 %v129
    %v224 = vunpack.c.l.b16 %v130
    %v225 = vunpack.c.h.b16 %v130
    %v226 = vunpack.c.l.b16 %v131
    %v227 = vunpack.c.h.b16 %v131
    %v228 = vunpack.c.l.b16 %v132
    %v229 = vunpack.c.h.b16 %v132
    %v230 = vunpack.c.l.b16 %v133
    %v231 = vunpack.c.h.b16 %v133
    %v232 = vunpack.c.l.b16 %v134
    %v233 = vunpack.c.h.b16 %v134
    %v234 = vunpack.c.l.b16 %v135
    %v235 = vunpack.c.h.b16 %v135
    %v236 = vunpack.c.l.b16 %v136
    %v237 = vunpack.c.h.b16 %v136
    %v238 = vunpack.c.l.b16 %v137
    %v239 = vunpack.c.h.b16 %v137
    %v240 = vunpack.c.l.b16 %v138
    %v241 = vunpack.c.h.b16 %v138
    %v242 = vunpack.c.l.b16 %v139
    %v243 = vunpack.c.h.b16 %v139
    %v244 = vunpack.c.l.b16 %v140
    %v245 = vunpack.c.h.b16 %v140
    %v246 = vunpack.c.l.b16 %v141
    %v247 = vunpack.c.h.b16 %v141
    %v248 = vunpack.c.l.b16 %v142
    %v249 = vunpack.c.h.b16 %v142
    %v250 = vunpack.c.l.b16 %v143
    %v251 = vunpack.c.h.b16 %v143
    %v252 = vunpack.c.l.b16 %v144
    %v253 = vunpack.c.h.b16 %v144
    %v254 = vunpack.c.l.b16 %v145
    %v255 = vunpack.c.h.b16 %v145
    %v256 = vunpack.c.l.b16 %v146
    %v257 = vunpack.c.h.b16 %v146
    %v258 = vunpack.c.l.b16 %v147
    %v259 = vunpack.c.h.b16 %v147
    %v260 = vunpack.c.l.b16 %v148
    %v261 = vunpack.c.h.b16 %v148
    %v262 = vunpack.c.l.b16 %v149
    %v263 = vunpack.c.h.b16 %v149
    %v264 = vunpack.c.l.b16 %v150
    %v265 = vunpack.c.h.b16 %v150
    %v266 = vunpack.c.l.b16 %v151
    %v267 = vunpack.c.h.b16 %v151
    %v268 = vunpack.c.l.b16 %v152
    %v269 = vunpack.c.h.b16 %v152
    %v270 = vunpack.c.l.b16 %v153
    %v271 = vunpack.c.h.b16 %v153
    %v272 = vpack.c.b16 %v212, %v208
    %v273 = vpack.c.b16 %v213, %v209
    %v274 = vpack.c.b16 %v214, %v210
    %v275 = vpack.c.b16 %v215, %v211
    %v276 = vpack.c.b16 %v220, %v216
    %v277 = vpack.c.b16 %v221, %v217
    %v278 = vpack.c.b16 %v222, %v218
    %v279 = vpack.c.b16 %v223, %v219
    %v280 = vpack.c.b16 %v228, %v224
    %v281 = vpack.c.b16 %v229, %v225
    %v282 = vpack.c.b16 %v230, %v226
    %v283 = vpack.c.b16 %v231, %v227
    %v284 = vpack.c.b16 %v236, %v232
    %v285 = vpack.c.b16 %v237, %v233
    %v286 = vpack.c.b16 %v238, %v234
    %v287 = vpack.c.b16 %v239, %v235
    %v288 = vpack.c.b16 %v244, %v240
    %v289 = vpack.c.b16 %v245, %v241
    %v290 = vpack.c.b16 %v246, %v242
    %v291 = vpack.c.b16 %v247, %v243
    %v292 = vpack.c.b16 %v252, %v248
    %v293 = vpack.c.b16 %v253, %v249
    %v294 = vpack.c.b16 %v254, %v250
    %v295 = vpack.c.b16 %v255, %v251
    %v296 = vpack.c.b16 %v260, %v256
    %v297 = vpack.c.b16 %v261, %v257
    %v298 = vpack.c.b16 %v262, %v258
    %v299 = vpack.c.b16 %v263, %v259
    %v300 = vpack.c.b16 %v268, %v264
    %v301 = vpack.c.b16 %v269, %v265
    %v302 = vpack.c.b16 %v270, %v266
    %v303 = vpack.c.b16 %v271, %v267
    %336 = vmatprep.subr.bf16.mxu0 %v273
    %337 = vmatpush1.bf16.msra.mxu0 %v272
    %338 = vmatprep.subr.bf16.mxu0 %v277
    %339 = vmatpush1.bf16.msra.mxu0 %v276
    %340 = vmatprep.subr.bf16.mxu0 %v281
    %341 = vmatpush1.bf16.msra.mxu0 %v280
    %342 = vmatprep.subr.bf16.mxu0 %v285
    %343 = vmatpush1.bf16.msra.mxu0 %v284
    %344 = vmatprep.subr.bf16.mxu0 %v289
    %345 = vmatpush1.bf16.msra.mxu0 %v288
    %346 = vmatprep.subr.bf16.mxu0 %v293
    %347 = vmatpush1.bf16.msra.mxu0 %v292
    %348 = vmatprep.subr.bf16.mxu0 %v297
    %349 = vmatpush1.bf16.msra.mxu0 %v296
    %350 = vmatprep.subr.bf16.mxu0 %v301
    %351 = vmatpush1.bf16.msra.mxu0 %v300
    %352 = vmatprep.subr.bf16.mxu0 0
    %353 = vmatpush1.bf16.msra.mxu0 0
    %354 = vmatprep.subr.bf16.mxu0 0
    %355 = vmatpush1.bf16.msra.mxu0 0
    %356 = vmatprep.subr.bf16.mxu0 0
    %357 = vmatpush1.bf16.msra.mxu0 0
    %358 = vmatprep.subr.bf16.mxu0 0
    %359 = vmatpush1.bf16.msra.mxu0 0
    %360 = vmatprep.subr.bf16.mxu0 0
    %361 = vmatpush1.bf16.msra.mxu0 0
    %362 = vmatprep.subr.bf16.mxu0 0
    %363 = vmatpush1.bf16.msra.mxu0 0
    %364 = vmatprep.subr.bf16.mxu0 0
    %365 = vmatpush1.bf16.msra.mxu0 0
    %366 = vmatprep.subr.bf16.mxu0 0
    %367 = vmatpush1.bf16.msra.mxu0 0
    %368 = vmatprep.mubr.bf16.mxu0 0
    %369 = vmatmul.mubr.bf16.gmra.mrb[0].mxu0 %v121
    %v370 = vpop.f32.mrb[0].mxu0
    %v371 = vadd.f32 %v159, %v370
    %v372 = vpop.f32.mrb[0].mxu0
    %v373 = vadd.f32 %v163, %v372
    %v374 = vpop.f32.mrb[0].mxu0
    %v375 = vadd.f32 %v159, %v374
    %v376 = vpop.f32.mrb[0].mxu0
    %v377 = vadd.f32 %v163, %v376
    %378 = vdwg.mxu0
    %379 = vmatprep.subr.bf16.mxu0 %v275
    %380 = vmatpush1.bf16.msra.mxu0 %v274
    %381 = vmatprep.subr.bf16.mxu0 %v279
    %382 = vmatpush1.bf16.msra.mxu0 %v278
    %383 = vmatprep.subr.bf16.mxu0 %v283
    %384 = vmatpush1.bf16.msra.mxu0 %v282
    %385 = vmatprep.subr.bf16.mxu0 %v287
    %386 = vmatpush1.bf16.msra.mxu0 %v286
    %387 = vmatprep.subr.bf16.mxu0 %v291
    %388 = vmatpush1.bf16.msra.mxu0 %v290
    %389 = vmatprep.subr.bf16.mxu0 %v295
    %390 = vmatpush1.bf16.msra.mxu0 %v294
    %391 = vmatprep.subr.bf16.mxu0 %v299
    %392 = vmatpush1.bf16.msra.mxu0 %v298
    %393 = vmatprep.subr.bf16.mxu0 %v303
    %394 = vmatpush1.bf16.msra.mxu0 %v302
    %395 = vmatprep.subr.bf16.mxu0 0
    %396 = vmatpush1.bf16.msra.mxu0 0
    %397 = vmatprep.subr.bf16.mxu0 0
    %398 = vmatpush1.bf16.msra.mxu0 0
    %399 = vmatprep.subr.bf16.mxu0 0
    %400 = vmatpush1.bf16.msra.mxu0 0
    %401 = vmatprep.subr.bf16.mxu0 0
    %402 = vmatpush1.bf16.msra.mxu0 0
    %403 = vmatprep.subr.bf16.mxu0 0
    %404 = vmatpush1.bf16.msra.mxu0 0
    %405 = vmatprep.subr.bf16.mxu0 0
    %406 = vmatpush1.bf16.msra.mxu0 0
    %407 = vmatprep.subr.bf16.mxu0 0
    %408 = vmatpush1.bf16.msra.mxu0 0
    %409 = vmatprep.subr.bf16.mxu0 0
    %410 = vmatpush1.bf16.msra.mxu0 0
    %411 = vmatprep.mubr.bf16.mxu0 0
    %412 = vmatmul.mubr.bf16.gmra.mrb[0].mxu0 %v121
    %v413 = vpop.f32.mrb[0].mxu0
    %v414 = vadd.f32 %v167, %v413
    %v415 = vpop.f32.mrb[0].mxu0
    %v416 = vadd.f32 %v171, %v415
    %v417 = vpop.f32.mrb[0].mxu0
    %v418 = vadd.f32 %v167, %v417
    %v419 = vpop.f32.mrb[0].mxu0
    %v420 = vadd.f32 %v171, %v419
    %421 = vdwg.mxu0
    %v422 = vmul.f32 %v414, 0.5
    %v423 = vmul.f32 %v416, 0.5
    %v424 = vmul.f32 %v418, 0.5
    %v425 = vmul.f32 %v420, 0.5
    %v426 = vmul.f32 %v414, 0.044715
    %v427 = vmul.f32 %v416, 0.044715
    %v428 = vmul.f32 %v418, 0.044715
    %v429 = vmul.f32 %v420, 0.044715
    %v430 = vmul.f32 %v426, %v414
    %v431 = vmul.f32 %v427, %v416
    %v432 = vmul.f32 %v428, %v418
    %v433 = vmul.f32 %v429, %v420
    %v434 = vmul.f32 %v430, %v414
    %v435 = vmul.f32 %v431, %v416
    %v436 = vmul.f32 %v432, %v418
    %v437 = vmul.f32 %v433, %v420
    %v438 = vadd.f32 %v414, %v434
    %v439 = vadd.f32 %v416, %v435
    %v440 = vadd.f32 %v418, %v436
    %v441 = vadd.f32 %v420, %v437
    %v442 = vmul.f32 %v438, 0.7978846
    %v443 = vmul.f32 %v439, 0.7978846
    %v444 = vmul.f32 %v440, 0.7978846
    %v445 = vmul.f32 %v441, 0.7978846
    %v446 = vtanh.pop %v442
    %v447 = vtanh.pop %v443
    %v448 = vtanh.pop %v444
    %v449 = vtanh.pop %v445
    %v450 = vadd.f32 %v446, 1.0
    %v451 = vadd.f32 %v447, 1.0
    %v452 = vadd.f32 %v448, 1.0
    %v453 = vadd.f32 %v449, 1.0
    %v454 = vmul.f32 %v422, %v450
    %v455 = vmul.f32 %v423, %v451
    %v456 = vmul.f32 %v424, %v452
    %v457 = vmul.f32 %v425, %v453
    %v458 = vmul.f32 %v371, %v454
    %v459 = vmul.f32 %v373, %v455
    %v460 = vmul.f32 %v375, %v456
    %v461 = vmul.f32 %v377, %v457
    %v462 = vpack.c.bf16 %v460, %v458
    %v463 = vpack.c.bf16 %v461, %v459
    %v464 = vld [vmem:[%s4] sm:$0xf]
    %v465 = vld [vmem:[%s4 + $0x4] sm:$0xf]
    %v466 = vld [vmem:[%s4 + $0x8] sm:$0xf]
    %v467 = vld [vmem:[%s4 + $0xc] sm:$0xf]
    %v468 = vld [vmem:[%s4 + $0x10] sm:$0xf]
    %v469 = vld [vmem:[%s4 + $0x14] sm:$0xf]
    %v470 = vld [vmem:[%s4 + $0x18] sm:$0xf]
    %v471 = vld [vmem:[%s4 + $0x1c] sm:$0xf]
    %v472 = vld [vmem:[%s4 + $0x20] sm:$0xf]
    %v473 = vld [vmem:[%s4 + $0x24] sm:$0xf]
    %v474 = vld [vmem:[%s4 + $0x28] sm:$0xf]
    %v475 = vld [vmem:[%s4 + $0x2c] sm:$0xf]
    %v476 = vld [vmem:[%s4 + $0x30] sm:$0xf]
    %v477 = vld [vmem:[%s4 + $0x34] sm:$0xf]
    %v478 = vld [vmem:[%s4 + $0x38] sm:$0xf]
    %v479 = vld [vmem:[%s4 + $0x3c] sm:$0xf]
    %v480 = vld [vmem:[%s4 + $0x40] sm:$0xf]
    %v481 = vld [vmem:[%s4 + $0x44] sm:$0xf]
    %v482 = vld [vmem:[%s4 + $0x48] sm:$0xf]
    %v483 = vld [vmem:[%s4 + $0x4c] sm:$0xf]
    %v484 = vld [vmem:[%s4 + $0x50] sm:$0xf]
    %v485 = vld [vmem:[%s4 + $0x54] sm:$0xf]
    %v486 = vld [vmem:[%s4 + $0x58] sm:$0xf]
    %v487 = vld [vmem:[%s4 + $0x5c] sm:$0xf]
    %v488 = vld [vmem:[%s4 + $0x60] sm:$0xf]
    %v489 = vld [vmem:[%s4 + $0x64] sm:$0xf]
    %v490 = vld [vmem:[%s4 + $0x68] sm:$0xf]
    %v491 = vld [vmem:[%s4 + $0x6c] sm:$0xf]
    %v492 = vld [vmem:[%s4 + $0x70] sm:$0xf]
    %v493 = vld [vmem:[%s4 + $0x74] sm:$0xf]
    %v494 = vld [vmem:[%s4 + $0x78] sm:$0xf]
    %v495 = vld [vmem:[%s4 + $0x7c] sm:$0xf]
    %v496 = vld [vmem:[%s5] sm:$0x1]
    %v498 = vlaneseq
    %v499 = vshrl.u32 %v498, 7
    %v500 = vsub.s32 0, %v499
    %v501 = vrot.slane %v496, %v500
    %v535 = vunpack.c.l.b16 %v464
    %v536 = vunpack.c.l.b16 %v465
    %v537 = vunpack.c.l.b16 %v466
    %v538 = vunpack.c.l.b16 %v467
    %v539 = vunpack.c.l.b16 %v468
    %v540 = vunpack.c.l.b16 %v469
    %v541 = vunpack.c.l.b16 %v470
    %v542 = vunpack.c.l.b16 %v471
    %v543 = vunpack.c.l.b16 %v472
    %v544 = vunpack.c.l.b16 %v473
    %v545 = vunpack.c.l.b16 %v474
    %v546 = vunpack.c.l.b16 %v475
    %v547 = vunpack.c.l.b16 %v476
    %v548 = vunpack.c.l.b16 %v477
    %v549 = vunpack.c.l.b16 %v478
    %v550 = vunpack.c.l.b16 %v479
    %v551 = vunpack.c.l.b16 %v480
    %v552 = vunpack.c.l.b16 %v481
    %v553 = vunpack.c.l.b16 %v482
    %v554 = vunpack.c.l.b16 %v483
    %v555 = vunpack.c.l.b16 %v484
    %v556 = vunpack.c.l.b16 %v485
    %v557 = vunpack.c.l.b16 %v486
    %v558 = vunpack.c.l.b16 %v487
    %v559 = vunpack.c.l.b16 %v488
    %v560 = vunpack.c.l.b16 %v489
    %v561 = vunpack.c.l.b16 %v490
    %v562 = vunpack.c.l.b16 %v491
    %v563 = vunpack.c.l.b16 %v492
    %v564 = vunpack.c.l.b16 %v493
    %v565 = vunpack.c.l.b16 %v494
    %v566 = vunpack.c.l.b16 %v495
    %v567 = vpack.c.b16 %v536, %v535
    %v568 = vpack.c.b16 %v538, %v537
    %v569 = vpack.c.b16 %v540, %v539
    %v570 = vpack.c.b16 %v542, %v541
    %v571 = vpack.c.b16 %v544, %v543
    %v572 = vpack.c.b16 %v546, %v545
    %v573 = vpack.c.b16 %v548, %v547
    %v574 = vpack.c.b16 %v550, %v549
    %v575 = vpack.c.b16 %v552, %v551
    %v576 = vpack.c.b16 %v554, %v553
    %v577 = vpack.c.b16 %v556, %v555
    %v578 = vpack.c.b16 %v558, %v557
    %v579 = vpack.c.b16 %v560, %v559
    %v580 = vpack.c.b16 %v562, %v561
    %v581 = vpack.c.b16 %v564, %v563
    %v582 = vpack.c.b16 %v566, %v565
    %599 = vmatprep.subr.bf16.mxu0 0
    %600 = vmatpush1.bf16.msra.mxu0 %v567
    %601 = vmatprep.subr.bf16.mxu0 0
    %602 = vmatpush1.bf16.msra.mxu0 %v568
    %603 = vmatprep.subr.bf16.mxu0 0
    %604 = vmatpush1.bf16.msra.mxu0 %v569
    %605 = vmatprep.subr.bf16.mxu0 0
    %606 = vmatpush1.bf16.msra.mxu0 %v570
    %607 = vmatprep.subr.bf16.mxu0 0
    %608 = vmatpush1.bf16.msra.mxu0 %v571
    %609 = vmatprep.subr.bf16.mxu0 0
    %610 = vmatpush1.bf16.msra.mxu0 %v572
    %611 = vmatprep.subr.bf16.mxu0 0
    %612 = vmatpush1.bf16.msra.mxu0 %v573
    %613 = vmatprep.subr.bf16.mxu0 0
    %614 = vmatpush1.bf16.msra.mxu0 %v574
    %615 = vmatprep.subr.bf16.mxu0 0
    %616 = vmatpush1.bf16.msra.mxu0 %v575
    %617 = vmatprep.subr.bf16.mxu0 0
    %618 = vmatpush1.bf16.msra.mxu0 %v576
    %619 = vmatprep.subr.bf16.mxu0 0
    %620 = vmatpush1.bf16.msra.mxu0 %v577
    %621 = vmatprep.subr.bf16.mxu0 0
    %622 = vmatpush1.bf16.msra.mxu0 %v578
    %623 = vmatprep.subr.bf16.mxu0 0
    %624 = vmatpush1.bf16.msra.mxu0 %v579
    %625 = vmatprep.subr.bf16.mxu0 0
    %626 = vmatpush1.bf16.msra.mxu0 %v580
    %627 = vmatprep.subr.bf16.mxu0 0
    %628 = vmatpush1.bf16.msra.mxu0 %v581
    %629 = vmatprep.subr.bf16.mxu0 0
    %630 = vmatpush1.bf16.msra.mxu0 %v582
    %631 = vmatprep.mubr.bf16.mxu0 %v463
    %632 = vmatmul.mubr.bf16.gmra.mrb[0].mxu0 %v462
    %v633 = vpop.f32.mrb[0].mxu0
    %v634 = vadd.f32 %v501, %v633
    %v635 = vpop.f32.mrb[0].mxu0
    %v636 = vpop.f32.mrb[0].mxu0
    %v637 = vadd.f32 %v501, %v636
    %v638 = vpop.f32.mrb[0].mxu0
    %639 = vdwg.mxu0
    %v640 = vmax.f32 %v634, -60.0
    %v641 = vmax.f32 %v637, -60.0
    %v642 = vsub.f32 0.0, %v640
    %v643 = vsub.f32 0.0, %v641
    %v644 = vmul.f32 %v642, 1.442695
    %v645 = vpow.pop %v644
    %v646 = vmul.f32 %v643, 1.442695
    %v647 = vpow.pop %v646
    %v648 = vadd.f32 %v645, 1.0
    %v649 = vadd.f32 %v647, 1.0
    %v650 = vrcp.pop %v648
    %v651 = vrcp.pop %v649
    %v652 = vpack.c.bf16 %v651, %v650
    %v653 = vpack.c.bf16 %v83, %v82
    %v654 = vld [vmem:[%s6] sm:$0xff]
    %v655 = vld [vmem:[%s6 + $0x8] sm:$0xff]
    %v656 = vld [vmem:[%s6 + $0x10] sm:$0xff]
    %v657 = vld [vmem:[%s6 + $0x18] sm:$0xff]
    %v658 = vld [vmem:[%s6 + $0x20] sm:$0xff]
    %v659 = vld [vmem:[%s6 + $0x28] sm:$0xff]
    %v660 = vld [vmem:[%s6 + $0x30] sm:$0xff]
    %v661 = vld [vmem:[%s6 + $0x38] sm:$0xff]
    %v662 = vld [vmem:[%s6 + $0x40] sm:$0xff]
    %v663 = vld [vmem:[%s6 + $0x48] sm:$0xff]
    %v664 = vld [vmem:[%s6 + $0x50] sm:$0xff]
    %v665 = vld [vmem:[%s6 + $0x58] sm:$0xff]
    %v666 = vld [vmem:[%s6 + $0x60] sm:$0xff]
    %v667 = vld [vmem:[%s6 + $0x68] sm:$0xff]
    %v668 = vld [vmem:[%s6 + $0x70] sm:$0xff]
    %v669 = vld [vmem:[%s6 + $0x78] sm:$0xff]
    %v670 = vld [vmem:[%s6 + $0x80] sm:$0xff]
    %v671 = vld [vmem:[%s6 + $0x88] sm:$0xff]
    %v672 = vld [vmem:[%s6 + $0x90] sm:$0xff]
    %v673 = vld [vmem:[%s6 + $0x98] sm:$0xff]
    %v674 = vld [vmem:[%s6 + $0xa0] sm:$0xff]
    %v675 = vld [vmem:[%s6 + $0xa8] sm:$0xff]
    %v676 = vld [vmem:[%s6 + $0xb0] sm:$0xff]
    %v677 = vld [vmem:[%s6 + $0xb8] sm:$0xff]
    %v678 = vld [vmem:[%s6 + $0xc0] sm:$0xff]
    %v679 = vld [vmem:[%s6 + $0xc8] sm:$0xff]
    %v680 = vld [vmem:[%s6 + $0xd0] sm:$0xff]
    %v681 = vld [vmem:[%s6 + $0xd8] sm:$0xff]
    %v682 = vld [vmem:[%s6 + $0xe0] sm:$0xff]
    %v683 = vld [vmem:[%s6 + $0xe8] sm:$0xff]
    %v684 = vld [vmem:[%s6 + $0xf0] sm:$0xff]
    %v685 = vld [vmem:[%s6 + $0xf8] sm:$0xff]
    %v686 = vld [vmem:[%s7] sm:$0x3]
    %v688 = vlaneseq
    %v689 = vshrl.u32 %v688, 7
    %v690 = vsub.s32 0, %v689
    %v691 = vrot.slane %v686, %v690
    %v692 = vlaneseq
    %v693 = vshrl.u32 %v692, 7
    %v694 = vsub.s32 1, %v693
    %v695 = vrot.slane %v686, %v694
    %v730 = vunpack.c.l.b16 %v654
    %v731 = vunpack.c.h.b16 %v654
    %v732 = vunpack.c.l.b16 %v655
    %v733 = vunpack.c.h.b16 %v655
    %v734 = vunpack.c.l.b16 %v656
    %v735 = vunpack.c.h.b16 %v656
    %v736 = vunpack.c.l.b16 %v657
    %v737 = vunpack.c.h.b16 %v657
    %v738 = vunpack.c.l.b16 %v658
    %v739 = vunpack.c.h.b16 %v658
    %v740 = vunpack.c.l.b16 %v659
    %v741 = vunpack.c.h.b16 %v659
    %v742 = vunpack.c.l.b16 %v660
    %v743 = vunpack.c.h.b16 %v660
    %v744 = vunpack.c.l.b16 %v661
    %v745 = vunpack.c.h.b16 %v661
    %v746 = vunpack.c.l.b16 %v662
    %v747 = vunpack.c.h.b16 %v662
    %v748 = vunpack.c.l.b16 %v663
    %v749 = vunpack.c.h.b16 %v663
    %v750 = vunpack.c.l.b16 %v664
    %v751 = vunpack.c.h.b16 %v664
    %v752 = vunpack.c.l.b16 %v665
    %v753 = vunpack.c.h.b16 %v665
    %v754 = vunpack.c.l.b16 %v666
    %v755 = vunpack.c.h.b16 %v666
    %v756 = vunpack.c.l.b16 %v667
    %v757 = vunpack.c.h.b16 %v667
    %v758 = vunpack.c.l.b16 %v668
    %v759 = vunpack.c.h.b16 %v668
    %v760 = vunpack.c.l.b16 %v669
    %v761 = vunpack.c.h.b16 %v669
    %v762 = vunpack.c.l.b16 %v670
    %v763 = vunpack.c.h.b16 %v670
    %v764 = vunpack.c.l.b16 %v671
    %v765 = vunpack.c.h.b16 %v671
    %v766 = vunpack.c.l.b16 %v672
    %v767 = vunpack.c.h.b16 %v672
    %v768 = vunpack.c.l.b16 %v673
    %v769 = vunpack.c.h.b16 %v673
    %v770 = vunpack.c.l.b16 %v674
    %v771 = vunpack.c.h.b16 %v674
    %v772 = vunpack.c.l.b16 %v675
    %v773 = vunpack.c.h.b16 %v675
    %v774 = vunpack.c.l.b16 %v676
    %v775 = vunpack.c.h.b16 %v676
    %v776 = vunpack.c.l.b16 %v677
    %v777 = vunpack.c.h.b16 %v677
    %v778 = vunpack.c.l.b16 %v678
    %v779 = vunpack.c.h.b16 %v678
    %v780 = vunpack.c.l.b16 %v679
    %v781 = vunpack.c.h.b16 %v679
    %v782 = vunpack.c.l.b16 %v680
    %v783 = vunpack.c.h.b16 %v680
    %v784 = vunpack.c.l.b16 %v681
    %v785 = vunpack.c.h.b16 %v681
    %v786 = vunpack.c.l.b16 %v682
    %v787 = vunpack.c.h.b16 %v682
    %v788 = vunpack.c.l.b16 %v683
    %v789 = vunpack.c.h.b16 %v683
    %v790 = vunpack.c.l.b16 %v684
    %v791 = vunpack.c.h.b16 %v684
    %v792 = vunpack.c.l.b16 %v685
    %v793 = vunpack.c.h.b16 %v685
    %v794 = vpack.c.b16 %v732, %v730
    %v795 = vpack.c.b16 %v733, %v731
    %v796 = vpack.c.b16 %v736, %v734
    %v797 = vpack.c.b16 %v737, %v735
    %v798 = vpack.c.b16 %v740, %v738
    %v799 = vpack.c.b16 %v741, %v739
    %v800 = vpack.c.b16 %v744, %v742
    %v801 = vpack.c.b16 %v745, %v743
    %v802 = vpack.c.b16 %v748, %v746
    %v803 = vpack.c.b16 %v749, %v747
    %v804 = vpack.c.b16 %v752, %v750
    %v805 = vpack.c.b16 %v753, %v751
    %v806 = vpack.c.b16 %v756, %v754
    %v807 = vpack.c.b16 %v757, %v755
    %v808 = vpack.c.b16 %v760, %v758
    %v809 = vpack.c.b16 %v761, %v759
    %v810 = vpack.c.b16 %v764, %v762
    %v811 = vpack.c.b16 %v765, %v763
    %v812 = vpack.c.b16 %v768, %v766
    %v813 = vpack.c.b16 %v769, %v767
    %v814 = vpack.c.b16 %v772, %v770
    %v815 = vpack.c.b16 %v773, %v771
    %v816 = vpack.c.b16 %v776, %v774
    %v817 = vpack.c.b16 %v777, %v775
    %v818 = vpack.c.b16 %v780, %v778
    %v819 = vpack.c.b16 %v781, %v779
    %v820 = vpack.c.b16 %v784, %v782
    %v821 = vpack.c.b16 %v785, %v783
    %v822 = vpack.c.b16 %v788, %v786
    %v823 = vpack.c.b16 %v789, %v787
    %v824 = vpack.c.b16 %v792, %v790
    %v825 = vpack.c.b16 %v793, %v791
    %858 = vmatprep.subr.bf16.mxu0 %v795
    %859 = vmatpush1.bf16.msra.mxu0 %v794
    %860 = vmatprep.subr.bf16.mxu0 %v797
    %861 = vmatpush1.bf16.msra.mxu0 %v796
    %862 = vmatprep.subr.bf16.mxu0 %v799
    %863 = vmatpush1.bf16.msra.mxu0 %v798
    %864 = vmatprep.subr.bf16.mxu0 %v801
    %865 = vmatpush1.bf16.msra.mxu0 %v800
    %866 = vmatprep.subr.bf16.mxu0 %v803
    %867 = vmatpush1.bf16.msra.mxu0 %v802
    %868 = vmatprep.subr.bf16.mxu0 %v805
    %869 = vmatpush1.bf16.msra.mxu0 %v804
    %870 = vmatprep.subr.bf16.mxu0 %v807
    %871 = vmatpush1.bf16.msra.mxu0 %v806
    %872 = vmatprep.subr.bf16.mxu0 %v809
    %873 = vmatpush1.bf16.msra.mxu0 %v808
    %874 = vmatprep.subr.bf16.mxu0 %v811
    %875 = vmatpush1.bf16.msra.mxu0 %v810
    %876 = vmatprep.subr.bf16.mxu0 %v813
    %877 = vmatpush1.bf16.msra.mxu0 %v812
    %878 = vmatprep.subr.bf16.mxu0 %v815
    %879 = vmatpush1.bf16.msra.mxu0 %v814
    %880 = vmatprep.subr.bf16.mxu0 %v817
    %881 = vmatpush1.bf16.msra.mxu0 %v816
    %882 = vmatprep.subr.bf16.mxu0 %v819
    %883 = vmatpush1.bf16.msra.mxu0 %v818
    %884 = vmatprep.subr.bf16.mxu0 %v821
    %885 = vmatpush1.bf16.msra.mxu0 %v820
    %886 = vmatprep.subr.bf16.mxu0 %v823
    %887 = vmatpush1.bf16.msra.mxu0 %v822
    %888 = vmatprep.subr.bf16.mxu0 %v825
    %889 = vmatpush1.bf16.msra.mxu0 %v824
    %890 = vmatprep.mubr.bf16.mxu0 %v653
    %891 = vmatmul.mubr.bf16.gmra.mrb[0].mxu0 %v652
    %v892 = vpop.f32.mrb[0].mxu0
    %v893 = vadd.f32 %v691, %v892
    %v894 = vpop.f32.mrb[0].mxu0
    %v895 = vadd.f32 %v695, %v894
    %v896 = vpop.f32.mrb[0].mxu0
    %v897 = vadd.f32 %v691, %v896
    %v898 = vpop.f32.mrb[0].mxu0
    %v899 = vadd.f32 %v695, %v898
    %900 = vdwg.mxu0
    %v901 = vmax.f32 %v893, -60.0
    %v902 = vmax.f32 %v897, -60.0
    %v903 = vsub.f32 0.0, %v901
    %v904 = vsub.f32 0.0, %v902
    %v905 = vmul.f32 %v903, 1.442695
    %v906 = vpow.pop %v905
    %v907 = vmul.f32 %v904, 1.442695
    %v908 = vpow.pop %v907
    %v909 = vadd.f32 %v906, 1.0
    %v910 = vadd.f32 %v908, 1.0
    %v911 = vrcp.pop %v909
    %v912 = vrcp.pop %v910
    %v913 = vmax.f32 %v895, -60.0
    %v914 = vmax.f32 %v899, -60.0
    %v915 = vsub.f32 0.0, %v913
    %v916 = vsub.f32 0.0, %v914
    %v917 = vmul.f32 %v915, 1.442695
    %v918 = vpow.pop %v917
    %v919 = vmul.f32 %v916, 1.442695
    %v920 = vpow.pop %v919
    %v921 = vadd.f32 %v918, 1.0
    %v922 = vadd.f32 %v920, 1.0
    %v923 = vrcp.pop %v921
    %v924 = vrcp.pop %v922
    %v925 = vld [vmem:[%s8] sm:$0xf]
    %v926 = vld [vmem:[%s8 + $0x4] sm:$0xf]
    %v927 = vld [vmem:[%s8 + $0x8] sm:$0xf]
    %v928 = vld [vmem:[%s8 + $0xc] sm:$0xf]
    %v929 = vld [vmem:[%s8 + $0x10] sm:$0xf]
    %v930 = vld [vmem:[%s8 + $0x14] sm:$0xf]
    %v931 = vld [vmem:[%s8 + $0x18] sm:$0xf]
    %v932 = vld [vmem:[%s8 + $0x1c] sm:$0xf]
    %v933 = vld [vmem:[%s8 + $0x20] sm:$0xf]
    %v934 = vld [vmem:[%s8 + $0x24] sm:$0xf]
    %v935 = vld [vmem:[%s8 + $0x28] sm:$0xf]
    %v936 = vld [vmem:[%s8 + $0x2c] sm:$0xf]
    %v937 = vld [vmem:[%s8 + $0x30] sm:$0xf]
    %v938 = vld [vmem:[%s8 + $0x34] sm:$0xf]
    %v939 = vld [vmem:[%s8 + $0x38] sm:$0xf]
    %v940 = vld [vmem:[%s8 + $0x3c] sm:$0xf]
    %v941 = vld [vmem:[%s10] sm:$0x1]
    %v943 = vlaneseq
    %v944 = vshrl.u32 %v943, 7
    %v945 = vsub.s32 0, %v944
    %v946 = vrot.slane %v941, %v945
    %v964 = vunpack.c.l.b16 %v925
    %v965 = vunpack.c.l.b16 %v926
    %v966 = vunpack.c.l.b16 %v927
    %v967 = vunpack.c.l.b16 %v928
    %v968 = vunpack.c.l.b16 %v929
    %v969 = vunpack.c.l.b16 %v930
    %v970 = vunpack.c.l.b16 %v931
    %v971 = vunpack.c.l.b16 %v932
    %v972 = vunpack.c.l.b16 %v933
    %v973 = vunpack.c.l.b16 %v934
    %v974 = vunpack.c.l.b16 %v935
    %v975 = vunpack.c.l.b16 %v936
    %v976 = vunpack.c.l.b16 %v937
    %v977 = vunpack.c.l.b16 %v938
    %v978 = vunpack.c.l.b16 %v939
    %v979 = vunpack.c.l.b16 %v940
    %v980 = vpack.c.b16 %v965, %v964
    %v981 = vpack.c.b16 %v967, %v966
    %v982 = vpack.c.b16 %v969, %v968
    %v983 = vpack.c.b16 %v971, %v970
    %v984 = vpack.c.b16 %v973, %v972
    %v985 = vpack.c.b16 %v975, %v974
    %v986 = vpack.c.b16 %v977, %v976
    %v987 = vpack.c.b16 %v979, %v978
    %996 = vmatprep.subr.bf16.mxu0 0
    %997 = vmatpush1.bf16.msra.mxu0 %v980
    %998 = vmatprep.subr.bf16.mxu0 0
    %999 = vmatpush1.bf16.msra.mxu0 %v981
    %1000 = vmatprep.subr.bf16.mxu0 0
    %1001 = vmatpush1.bf16.msra.mxu0 %v982
    %1002 = vmatprep.subr.bf16.mxu0 0
    %1003 = vmatpush1.bf16.msra.mxu0 %v983
    %1004 = vmatprep.subr.bf16.mxu0 0
    %1005 = vmatpush1.bf16.msra.mxu0 %v984
    %1006 = vmatprep.subr.bf16.mxu0 0
    %1007 = vmatpush1.bf16.msra.mxu0 %v985
    %1008 = vmatprep.subr.bf16.mxu0 0
    %1009 = vmatpush1.bf16.msra.mxu0 %v986
    %1010 = vmatprep.subr.bf16.mxu0 0
    %1011 = vmatpush1.bf16.msra.mxu0 %v987
    %1012 = vmatprep.subr.bf16.mxu0 0
    %1013 = vmatpush1.bf16.msra.mxu0 0
    %1014 = vmatprep.subr.bf16.mxu0 0
    %1015 = vmatpush1.bf16.msra.mxu0 0
    %1016 = vmatprep.subr.bf16.mxu0 0
    %1017 = vmatpush1.bf16.msra.mxu0 0
    %1018 = vmatprep.subr.bf16.mxu0 0
    %1019 = vmatpush1.bf16.msra.mxu0 0
    %1020 = vmatprep.subr.bf16.mxu0 0
    %1021 = vmatpush1.bf16.msra.mxu0 0
    %1022 = vmatprep.subr.bf16.mxu0 0
    %1023 = vmatpush1.bf16.msra.mxu0 0
    %1024 = vmatprep.subr.bf16.mxu0 0
    %1025 = vmatpush1.bf16.msra.mxu0 0
    %1026 = vmatprep.subr.bf16.mxu0 0
    %1027 = vmatpush1.bf16.msra.mxu0 0
    %1028 = vmatprep.mubr.bf16.mxu0 0
    %1029 = vmatmul.mubr.bf16.gmra.mrb[0].mxu0 %v652
    %v1030 = vpop.f32.mrb[0].mxu0
    %v1031 = vadd.f32 %v946, %v1030
    %v1032 = vpop.f32.mrb[0].mxu0
    %v1033 = vpop.f32.mrb[0].mxu0
    %v1034 = vadd.f32 %v946, %v1033
    %v1035 = vpop.f32.mrb[0].mxu0
    %1036 = vdwg.mxu0
    %v1037 = vld [vmem:[%s9] sm:$0xf]
    %v1038 = vld [vmem:[%s9 + $0x4] sm:$0xf]
    %v1039 = vld [vmem:[%s9 + $0x8] sm:$0xf]
    %v1040 = vld [vmem:[%s9 + $0xc] sm:$0xf]
    %v1041 = vld [vmem:[%s9 + $0x10] sm:$0xf]
    %v1042 = vld [vmem:[%s9 + $0x14] sm:$0xf]
    %v1043 = vld [vmem:[%s9 + $0x18] sm:$0xf]
    %v1044 = vld [vmem:[%s9 + $0x1c] sm:$0xf]
    %v1045 = vld [vmem:[%s9 + $0x20] sm:$0xf]
    %v1046 = vld [vmem:[%s9 + $0x24] sm:$0xf]
    %v1047 = vld [vmem:[%s9 + $0x28] sm:$0xf]
    %v1048 = vld [vmem:[%s9 + $0x2c] sm:$0xf]
    %v1049 = vld [vmem:[%s9 + $0x30] sm:$0xf]
    %v1050 = vld [vmem:[%s9 + $0x34] sm:$0xf]
    %v1051 = vld [vmem:[%s9 + $0x38] sm:$0xf]
    %v1052 = vld [vmem:[%s9 + $0x3c] sm:$0xf]
    %v1053 = vld [vmem:[%s11] sm:$0x1]
    %v1055 = vlaneseq
    %v1056 = vshrl.u32 %v1055, 7
    %v1057 = vsub.s32 0, %v1056
    %v1058 = vrot.slane %v1053, %v1057
    %v1076 = vunpack.c.l.b16 %v1037
    %v1077 = vunpack.c.l.b16 %v1038
    %v1078 = vunpack.c.l.b16 %v1039
    %v1079 = vunpack.c.l.b16 %v1040
    %v1080 = vunpack.c.l.b16 %v1041
    %v1081 = vunpack.c.l.b16 %v1042
    %v1082 = vunpack.c.l.b16 %v1043
    %v1083 = vunpack.c.l.b16 %v1044
    %v1084 = vunpack.c.l.b16 %v1045
    %v1085 = vunpack.c.l.b16 %v1046
    %v1086 = vunpack.c.l.b16 %v1047
    %v1087 = vunpack.c.l.b16 %v1048
    %v1088 = vunpack.c.l.b16 %v1049
    %v1089 = vunpack.c.l.b16 %v1050
    %v1090 = vunpack.c.l.b16 %v1051
    %v1091 = vunpack.c.l.b16 %v1052
    %v1092 = vpack.c.b16 %v1077, %v1076
    %v1093 = vpack.c.b16 %v1079, %v1078
    %v1094 = vpack.c.b16 %v1081, %v1080
    %v1095 = vpack.c.b16 %v1083, %v1082
    %v1096 = vpack.c.b16 %v1085, %v1084
    %v1097 = vpack.c.b16 %v1087, %v1086
    %v1098 = vpack.c.b16 %v1089, %v1088
    %v1099 = vpack.c.b16 %v1091, %v1090
    %1108 = vmatprep.subr.bf16.mxu0 0
    %1109 = vmatpush1.bf16.msra.mxu0 %v1092
    %1110 = vmatprep.subr.bf16.mxu0 0
    %1111 = vmatpush1.bf16.msra.mxu0 %v1093
    %1112 = vmatprep.subr.bf16.mxu0 0
    %1113 = vmatpush1.bf16.msra.mxu0 %v1094
    %1114 = vmatprep.subr.bf16.mxu0 0
    %1115 = vmatpush1.bf16.msra.mxu0 %v1095
    %1116 = vmatprep.subr.bf16.mxu0 0
    %1117 = vmatpush1.bf16.msra.mxu0 %v1096
    %1118 = vmatprep.subr.bf16.mxu0 0
    %1119 = vmatpush1.bf16.msra.mxu0 %v1097
    %1120 = vmatprep.subr.bf16.mxu0 0
    %1121 = vmatpush1.bf16.msra.mxu0 %v1098
    %1122 = vmatprep.subr.bf16.mxu0 0
    %1123 = vmatpush1.bf16.msra.mxu0 %v1099
    %1124 = vmatprep.subr.bf16.mxu0 0
    %1125 = vmatpush1.bf16.msra.mxu0 0
    %1126 = vmatprep.subr.bf16.mxu0 0
    %1127 = vmatpush1.bf16.msra.mxu0 0
    %1128 = vmatprep.subr.bf16.mxu0 0
    %1129 = vmatpush1.bf16.msra.mxu0 0
    %1130 = vmatprep.subr.bf16.mxu0 0
    %1131 = vmatpush1.bf16.msra.mxu0 0
    %1132 = vmatprep.subr.bf16.mxu0 0
    %1133 = vmatpush1.bf16.msra.mxu0 0
    %1134 = vmatprep.subr.bf16.mxu0 0
    %1135 = vmatpush1.bf16.msra.mxu0 0
    %1136 = vmatprep.subr.bf16.mxu0 0
    %1137 = vmatpush1.bf16.msra.mxu0 0
    %1138 = vmatprep.subr.bf16.mxu0 0
    %1139 = vmatpush1.bf16.msra.mxu0 0
    %1140 = vmatprep.mubr.bf16.mxu0 0
    %1141 = vmatmul.mubr.bf16.gmra.mrb[0].mxu0 %v653
    %v1142 = vpop.f32.mrb[0].mxu0
    %v1143 = vadd.f32 %v1058, %v1142
    %v1144 = vpop.f32.mrb[0].mxu0
    %v1145 = vpop.f32.mrb[0].mxu0
    %v1146 = vadd.f32 %v1058, %v1145
    %v1147 = vpop.f32.mrb[0].mxu0
    %1148 = vdwg.mxu0
    %v1149 = vmul.f32 %v911, %v1143
    %v1150 = vmul.f32 %v912, %v1146
    %v1151 = vadd.f32 %v1031, %v1149
    %v1152 = vadd.f32 %v1034, %v1150
    %v1153 = vtanh.pop %v1151
    %v1154 = vtanh.pop %v1152
    %v1155 = vsub.f32 1.0, %v923
    %v1156 = vsub.f32 1.0, %v924
    %v1157 = vmul.f32 %v1155, %v1153
    %v1158 = vmul.f32 %v1156, %v1154
    %v1159 = vmul.f32 %v923, %v82
    %v1160 = vmul.f32 %v924, %v83
    %v1161 = vadd.f32 %v1157, %v1159
    %v1162 = vadd.f32 %v1158, %v1160
    %v1163 = vpack.c.bf16 %v1162, %v1161
    %v1164 = vld [vmem:[%s12] sm:$0xff]
    %v1165 = vld [vmem:[%s12 + $0x8] sm:$0xff]
    %v1166 = vld [vmem:[%s12 + $0x10] sm:$0xff]
    %v1167 = vld [vmem:[%s12 + $0x18] sm:$0xff]
    %v1168 = vld [vmem:[%s12 + $0x20] sm:$0xff]
    %v1169 = vld [vmem:[%s12 + $0x28] sm:$0xff]
    %v1170 = vld [vmem:[%s12 + $0x30] sm:$0xff]
    %v1171 = vld [vmem:[%s12 + $0x38] sm:$0xff]
    %v1172 = vld [vmem:[%s12 + $0x40] sm:$0xff]
    %v1173 = vld [vmem:[%s12 + $0x48] sm:$0xff]
    %v1174 = vld [vmem:[%s12 + $0x50] sm:$0xff]
    %v1175 = vld [vmem:[%s12 + $0x58] sm:$0xff]
    %v1176 = vld [vmem:[%s12 + $0x60] sm:$0xff]
    %v1177 = vld [vmem:[%s12 + $0x68] sm:$0xff]
    %v1178 = vld [vmem:[%s12 + $0x70] sm:$0xff]
    %v1179 = vld [vmem:[%s12 + $0x78] sm:$0xff]
    %v1180 = vld [vmem:[%s12 + $0x80] sm:$0xff]
    %v1181 = vld [vmem:[%s12 + $0x88] sm:$0xff]
    %v1182 = vld [vmem:[%s12 + $0x90] sm:$0xff]
    %v1183 = vld [vmem:[%s12 + $0x98] sm:$0xff]
    %v1184 = vld [vmem:[%s12 + $0xa0] sm:$0xff]
    %v1185 = vld [vmem:[%s12 + $0xa8] sm:$0xff]
    %v1186 = vld [vmem:[%s12 + $0xb0] sm:$0xff]
    %v1187 = vld [vmem:[%s12 + $0xb8] sm:$0xff]
    %v1188 = vld [vmem:[%s12 + $0xc0] sm:$0xff]
    %v1189 = vld [vmem:[%s12 + $0xc8] sm:$0xff]
    %v1190 = vld [vmem:[%s12 + $0xd0] sm:$0xff]
    %v1191 = vld [vmem:[%s12 + $0xd8] sm:$0xff]
    %v1192 = vld [vmem:[%s12 + $0xe0] sm:$0xff]
    %v1193 = vld [vmem:[%s12 + $0xe8] sm:$0xff]
    %v1194 = vld [vmem:[%s12 + $0xf0] sm:$0xff]
    %v1195 = vld [vmem:[%s12 + $0xf8] sm:$0xff]
    %v1196 = vld [vmem:[%s13] sm:$0x3]
    %v1198 = vlaneseq
    %v1199 = vshrl.u32 %v1198, 7
    %v1200 = vsub.s32 0, %v1199
    %v1201 = vrot.slane %v1196, %v1200
    %v1202 = vlaneseq
    %v1203 = vshrl.u32 %v1202, 7
    %v1204 = vsub.s32 1, %v1203
    %v1205 = vrot.slane %v1196, %v1204
    %v1240 = vunpack.c.l.b16 %v1164
    %v1241 = vunpack.c.h.b16 %v1164
    %v1242 = vunpack.c.l.b16 %v1165
    %v1243 = vunpack.c.h.b16 %v1165
    %v1244 = vunpack.c.l.b16 %v1166
    %v1245 = vunpack.c.h.b16 %v1166
    %v1246 = vunpack.c.l.b16 %v1167
    %v1247 = vunpack.c.h.b16 %v1167
    %v1248 = vunpack.c.l.b16 %v1168
    %v1249 = vunpack.c.h.b16 %v1168
    %v1250 = vunpack.c.l.b16 %v1169
    %v1251 = vunpack.c.h.b16 %v1169
    %v1252 = vunpack.c.l.b16 %v1170
    %v1253 = vunpack.c.h.b16 %v1170
    %v1254 = vunpack.c.l.b16 %v1171
    %v1255 = vunpack.c.h.b16 %v1171
    %v1256 = vunpack.c.l.b16 %v1172
    %v1257 = vunpack.c.h.b16 %v1172
    %v1258 = vunpack.c.l.b16 %v1173
    %v1259 = vunpack.c.h.b16 %v1173
    %v1260 = vunpack.c.l.b16 %v1174
    %v1261 = vunpack.c.h.b16 %v1174
    %v1262 = vunpack.c.l.b16 %v1175
    %v1263 = vunpack.c.h.b16 %v1175
    %v1264 = vunpack.c.l.b16 %v1176
    %v1265 = vunpack.c.h.b16 %v1176
    %v1266 = vunpack.c.l.b16 %v1177
    %v1267 = vunpack.c.h.b16 %v1177
    %v1268 = vunpack.c.l.b16 %v1178
    %v1269 = vunpack.c.h.b16 %v1178
    %v1270 = vunpack.c.l.b16 %v1179
    %v1271 = vunpack.c.h.b16 %v1179
    %v1272 = vunpack.c.l.b16 %v1180
    %v1273 = vunpack.c.h.b16 %v1180
    %v1274 = vunpack.c.l.b16 %v1181
    %v1275 = vunpack.c.h.b16 %v1181
    %v1276 = vunpack.c.l.b16 %v1182
    %v1277 = vunpack.c.h.b16 %v1182
    %v1278 = vunpack.c.l.b16 %v1183
    %v1279 = vunpack.c.h.b16 %v1183
    %v1280 = vunpack.c.l.b16 %v1184
    %v1281 = vunpack.c.h.b16 %v1184
    %v1282 = vunpack.c.l.b16 %v1185
    %v1283 = vunpack.c.h.b16 %v1185
    %v1284 = vunpack.c.l.b16 %v1186
    %v1285 = vunpack.c.h.b16 %v1186
    %v1286 = vunpack.c.l.b16 %v1187
    %v1287 = vunpack.c.h.b16 %v1187
    %v1288 = vunpack.c.l.b16 %v1188
    %v1289 = vunpack.c.h.b16 %v1188
    %v1290 = vunpack.c.l.b16 %v1189
    %v1291 = vunpack.c.h.b16 %v1189
    %v1292 = vunpack.c.l.b16 %v1190
    %v1293 = vunpack.c.h.b16 %v1190
    %v1294 = vunpack.c.l.b16 %v1191
    %v1295 = vunpack.c.h.b16 %v1191
    %v1296 = vunpack.c.l.b16 %v1192
    %v1297 = vunpack.c.h.b16 %v1192
    %v1298 = vunpack.c.l.b16 %v1193
    %v1299 = vunpack.c.h.b16 %v1193
    %v1300 = vunpack.c.l.b16 %v1194
    %v1301 = vunpack.c.h.b16 %v1194
    %v1302 = vunpack.c.l.b16 %v1195
    %v1303 = vunpack.c.h.b16 %v1195
    %v1304 = vpack.c.b16 %v1242, %v1240
    %v1305 = vpack.c.b16 %v1243, %v1241
    %v1306 = vpack.c.b16 %v1246, %v1244
    %v1307 = vpack.c.b16 %v1247, %v1245
    %v1308 = vpack.c.b16 %v1250, %v1248
    %v1309 = vpack.c.b16 %v1251, %v1249
    %v1310 = vpack.c.b16 %v1254, %v1252
    %v1311 = vpack.c.b16 %v1255, %v1253
    %v1312 = vpack.c.b16 %v1258, %v1256
    %v1313 = vpack.c.b16 %v1259, %v1257
    %v1314 = vpack.c.b16 %v1262, %v1260
    %v1315 = vpack.c.b16 %v1263, %v1261
    %v1316 = vpack.c.b16 %v1266, %v1264
    %v1317 = vpack.c.b16 %v1267, %v1265
    %v1318 = vpack.c.b16 %v1270, %v1268
    %v1319 = vpack.c.b16 %v1271, %v1269
    %v1320 = vpack.c.b16 %v1274, %v1272
    %v1321 = vpack.c.b16 %v1275, %v1273
    %v1322 = vpack.c.b16 %v1278, %v1276
    %v1323 = vpack.c.b16 %v1279, %v1277
    %v1324 = vpack.c.b16 %v1282, %v1280
    %v1325 = vpack.c.b16 %v1283, %v1281
    %v1326 = vpack.c.b16 %v1286, %v1284
    %v1327 = vpack.c.b16 %v1287, %v1285
    %v1328 = vpack.c.b16 %v1290, %v1288
    %v1329 = vpack.c.b16 %v1291, %v1289
    %v1330 = vpack.c.b16 %v1294, %v1292
    %v1331 = vpack.c.b16 %v1295, %v1293
    %v1332 = vpack.c.b16 %v1298, %v1296
    %v1333 = vpack.c.b16 %v1299, %v1297
    %v1334 = vpack.c.b16 %v1302, %v1300
    %v1335 = vpack.c.b16 %v1303, %v1301
    %1368 = vmatprep.subr.bf16.mxu0 %v1305
    %1369 = vmatpush1.bf16.msra.mxu0 %v1304
    %1370 = vmatprep.subr.bf16.mxu0 %v1307
    %1371 = vmatpush1.bf16.msra.mxu0 %v1306
    %1372 = vmatprep.subr.bf16.mxu0 %v1309
    %1373 = vmatpush1.bf16.msra.mxu0 %v1308
    %1374 = vmatprep.subr.bf16.mxu0 %v1311
    %1375 = vmatpush1.bf16.msra.mxu0 %v1310
    %1376 = vmatprep.subr.bf16.mxu0 %v1313
    %1377 = vmatpush1.bf16.msra.mxu0 %v1312
    %1378 = vmatprep.subr.bf16.mxu0 %v1315
    %1379 = vmatpush1.bf16.msra.mxu0 %v1314
    %1380 = vmatprep.subr.bf16.mxu0 %v1317
    %1381 = vmatpush1.bf16.msra.mxu0 %v1316
    %1382 = vmatprep.subr.bf16.mxu0 %v1319
    %1383 = vmatpush1.bf16.msra.mxu0 %v1318
    %1384 = vmatprep.subr.bf16.mxu0 %v1321
    %1385 = vmatpush1.bf16.msra.mxu0 %v1320
    %1386 = vmatprep.subr.bf16.mxu0 %v1323
    %1387 = vmatpush1.bf16.msra.mxu0 %v1322
    %1388 = vmatprep.subr.bf16.mxu0 %v1325
    %1389 = vmatpush1.bf16.msra.mxu0 %v1324
    %1390 = vmatprep.subr.bf16.mxu0 %v1327
    %1391 = vmatpush1.bf16.msra.mxu0 %v1326
    %1392 = vmatprep.subr.bf16.mxu0 %v1329
    %1393 = vmatpush1.bf16.msra.mxu0 %v1328
    %1394 = vmatprep.subr.bf16.mxu0 %v1331
    %1395 = vmatpush1.bf16.msra.mxu0 %v1330
    %1396 = vmatprep.subr.bf16.mxu0 %v1333
    %1397 = vmatpush1.bf16.msra.mxu0 %v1332
    %1398 = vmatprep.subr.bf16.mxu0 %v1335
    %1399 = vmatpush1.bf16.msra.mxu0 %v1334
    %1400 = vmatprep.mubr.bf16.mxu0 %v1163
    %1401 = vmatmul.mubr.bf16.gmra.mrb[0].mxu0 %v1163
    %v1402 = vpop.f32.mrb[0].mxu0
    %v1403 = vadd.f32 %v1201, %v1402
    %v1404 = vpop.f32.mrb[0].mxu0
    %v1405 = vadd.f32 %v1205, %v1404
    %v1406 = vpop.f32.mrb[0].mxu0
    %v1407 = vadd.f32 %v1201, %v1406
    %v1408 = vpop.f32.mrb[0].mxu0
    %v1409 = vadd.f32 %v1205, %v1408
    %1410 = vdwg.mxu0
    %v1411 = vmax.f32 %v1403, -60.0
    %v1412 = vmax.f32 %v1407, -60.0
    %v1413 = vsub.f32 0.0, %v1411
    %v1414 = vsub.f32 0.0, %v1412
    %v1415 = vmul.f32 %v1413, 1.442695
    %v1416 = vpow.pop %v1415
    %v1417 = vmul.f32 %v1414, 1.442695
    %v1418 = vpow.pop %v1417
    %v1419 = vadd.f32 %v1416, 1.0
    %v1420 = vadd.f32 %v1418, 1.0
    %v1421 = vrcp.pop %v1419
    %v1422 = vrcp.pop %v1420
    %v1423 = vmax.f32 %v1405, -60.0
    %v1424 = vmax.f32 %v1409, -60.0
    %v1425 = vsub.f32 0.0, %v1423
    %v1426 = vsub.f32 0.0, %v1424
    %v1427 = vmul.f32 %v1425, 1.442695
    %v1428 = vpow.pop %v1427
    %v1429 = vmul.f32 %v1426, 1.442695
    %v1430 = vpow.pop %v1429
    %v1431 = vadd.f32 %v1428, 1.0
    %v1432 = vadd.f32 %v1430, 1.0
    %v1433 = vrcp.pop %v1431
    %v1434 = vrcp.pop %v1432
    %v1435 = vld [vmem:[%s14] sm:$0xf]
    %v1436 = vld [vmem:[%s14 + $0x4] sm:$0xf]
    %v1437 = vld [vmem:[%s14 + $0x8] sm:$0xf]
    %v1438 = vld [vmem:[%s14 + $0xc] sm:$0xf]
    %v1439 = vld [vmem:[%s14 + $0x10] sm:$0xf]
    %v1440 = vld [vmem:[%s14 + $0x14] sm:$0xf]
    %v1441 = vld [vmem:[%s14 + $0x18] sm:$0xf]
    %v1442 = vld [vmem:[%s14 + $0x1c] sm:$0xf]
    %v1443 = vld [vmem:[%s14 + $0x20] sm:$0xf]
    %v1444 = vld [vmem:[%s14 + $0x24] sm:$0xf]
    %v1445 = vld [vmem:[%s14 + $0x28] sm:$0xf]
    %v1446 = vld [vmem:[%s14 + $0x2c] sm:$0xf]
    %v1447 = vld [vmem:[%s14 + $0x30] sm:$0xf]
    %v1448 = vld [vmem:[%s14 + $0x34] sm:$0xf]
    %v1449 = vld [vmem:[%s14 + $0x38] sm:$0xf]
    %v1450 = vld [vmem:[%s14 + $0x3c] sm:$0xf]
    %v1451 = vld [vmem:[%s16] sm:$0x1]
    %v1453 = vlaneseq
    %v1454 = vshrl.u32 %v1453, 7
    %v1455 = vsub.s32 0, %v1454
    %v1456 = vrot.slane %v1451, %v1455
    %v1474 = vunpack.c.l.b16 %v1435
    %v1475 = vunpack.c.l.b16 %v1436
    %v1476 = vunpack.c.l.b16 %v1437
    %v1477 = vunpack.c.l.b16 %v1438
    %v1478 = vunpack.c.l.b16 %v1439
    %v1479 = vunpack.c.l.b16 %v1440
    %v1480 = vunpack.c.l.b16 %v1441
    %v1481 = vunpack.c.l.b16 %v1442
    %v1482 = vunpack.c.l.b16 %v1443
    %v1483 = vunpack.c.l.b16 %v1444
    %v1484 = vunpack.c.l.b16 %v1445
    %v1485 = vunpack.c.l.b16 %v1446
    %v1486 = vunpack.c.l.b16 %v1447
    %v1487 = vunpack.c.l.b16 %v1448
    %v1488 = vunpack.c.l.b16 %v1449
    %v1489 = vunpack.c.l.b16 %v1450
    %v1490 = vpack.c.b16 %v1475, %v1474
    %v1491 = vpack.c.b16 %v1477, %v1476
    %v1492 = vpack.c.b16 %v1479, %v1478
    %v1493 = vpack.c.b16 %v1481, %v1480
    %v1494 = vpack.c.b16 %v1483, %v1482
    %v1495 = vpack.c.b16 %v1485, %v1484
    %v1496 = vpack.c.b16 %v1487, %v1486
    %v1497 = vpack.c.b16 %v1489, %v1488
    %1506 = vmatprep.subr.bf16.mxu0 0
    %1507 = vmatpush1.bf16.msra.mxu0 %v1490
    %1508 = vmatprep.subr.bf16.mxu0 0
    %1509 = vmatpush1.bf16.msra.mxu0 %v1491
    %1510 = vmatprep.subr.bf16.mxu0 0
    %1511 = vmatpush1.bf16.msra.mxu0 %v1492
    %1512 = vmatprep.subr.bf16.mxu0 0
    %1513 = vmatpush1.bf16.msra.mxu0 %v1493
    %1514 = vmatprep.subr.bf16.mxu0 0
    %1515 = vmatpush1.bf16.msra.mxu0 %v1494
    %1516 = vmatprep.subr.bf16.mxu0 0
    %1517 = vmatpush1.bf16.msra.mxu0 %v1495
    %1518 = vmatprep.subr.bf16.mxu0 0
    %1519 = vmatpush1.bf16.msra.mxu0 %v1496
    %1520 = vmatprep.subr.bf16.mxu0 0
    %1521 = vmatpush1.bf16.msra.mxu0 %v1497
    %1522 = vmatprep.subr.bf16.mxu0 0
    %1523 = vmatpush1.bf16.msra.mxu0 0
    %1524 = vmatprep.subr.bf16.mxu0 0
    %1525 = vmatpush1.bf16.msra.mxu0 0
    %1526 = vmatprep.subr.bf16.mxu0 0
    %1527 = vmatpush1.bf16.msra.mxu0 0
    %1528 = vmatprep.subr.bf16.mxu0 0
    %1529 = vmatpush1.bf16.msra.mxu0 0
    %1530 = vmatprep.subr.bf16.mxu0 0
    %1531 = vmatpush1.bf16.msra.mxu0 0
    %1532 = vmatprep.subr.bf16.mxu0 0
    %1533 = vmatpush1.bf16.msra.mxu0 0
    %1534 = vmatprep.subr.bf16.mxu0 0
    %1535 = vmatpush1.bf16.msra.mxu0 0
    %1536 = vmatprep.subr.bf16.mxu0 0
    %1537 = vmatpush1.bf16.msra.mxu0 0
    %1538 = vmatprep.mubr.bf16.mxu0 0
    %1539 = vmatmul.mubr.bf16.gmra.mrb[0].mxu0 %v1163
    %v1540 = vpop.f32.mrb[0].mxu0
    %v1541 = vadd.f32 %v1456, %v1540
    %v1542 = vpop.f32.mrb[0].mxu0
    %v1543 = vpop.f32.mrb[0].mxu0
    %v1544 = vadd.f32 %v1456, %v1543
    %v1545 = vpop.f32.mrb[0].mxu0
    %1546 = vdwg.mxu0
    %v1547 = vld [vmem:[%s15] sm:$0xf]
    %v1548 = vld [vmem:[%s15 + $0x4] sm:$0xf]
    %v1549 = vld [vmem:[%s15 + $0x8] sm:$0xf]
    %v1550 = vld [vmem:[%s15 + $0xc] sm:$0xf]
    %v1551 = vld [vmem:[%s15 + $0x10] sm:$0xf]
    %v1552 = vld [vmem:[%s15 + $0x14] sm:$0xf]
    %v1553 = vld [vmem:[%s15 + $0x18] sm:$0xf]
    %v1554 = vld [vmem:[%s15 + $0x1c] sm:$0xf]
    %v1555 = vld [vmem:[%s15 + $0x20] sm:$0xf]
    %v1556 = vld [vmem:[%s15 + $0x24] sm:$0xf]
    %v1557 = vld [vmem:[%s15 + $0x28] sm:$0xf]
    %v1558 = vld [vmem:[%s15 + $0x2c] sm:$0xf]
    %v1559 = vld [vmem:[%s15 + $0x30] sm:$0xf]
    %v1560 = vld [vmem:[%s15 + $0x34] sm:$0xf]
    %v1561 = vld [vmem:[%s15 + $0x38] sm:$0xf]
    %v1562 = vld [vmem:[%s15 + $0x3c] sm:$0xf]
    %v1563 = vld [vmem:[%s17] sm:$0x1]
    %v1565 = vlaneseq
    %v1566 = vshrl.u32 %v1565, 7
    %v1567 = vsub.s32 0, %v1566
    %v1568 = vrot.slane %v1563, %v1567
    %v1586 = vunpack.c.l.b16 %v1547
    %v1587 = vunpack.c.l.b16 %v1548
    %v1588 = vunpack.c.l.b16 %v1549
    %v1589 = vunpack.c.l.b16 %v1550
    %v1590 = vunpack.c.l.b16 %v1551
    %v1591 = vunpack.c.l.b16 %v1552
    %v1592 = vunpack.c.l.b16 %v1553
    %v1593 = vunpack.c.l.b16 %v1554
    %v1594 = vunpack.c.l.b16 %v1555
    %v1595 = vunpack.c.l.b16 %v1556
    %v1596 = vunpack.c.l.b16 %v1557
    %v1597 = vunpack.c.l.b16 %v1558
    %v1598 = vunpack.c.l.b16 %v1559
    %v1599 = vunpack.c.l.b16 %v1560
    %v1600 = vunpack.c.l.b16 %v1561
    %v1601 = vunpack.c.l.b16 %v1562
    %v1602 = vpack.c.b16 %v1587, %v1586
    %v1603 = vpack.c.b16 %v1589, %v1588
    %v1604 = vpack.c.b16 %v1591, %v1590
    %v1605 = vpack.c.b16 %v1593, %v1592
    %v1606 = vpack.c.b16 %v1595, %v1594
    %v1607 = vpack.c.b16 %v1597, %v1596
    %v1608 = vpack.c.b16 %v1599, %v1598
    %v1609 = vpack.c.b16 %v1601, %v1600
    %1618 = vmatprep.subr.bf16.mxu0 0
    %1619 = vmatpush1.bf16.msra.mxu0 %v1602
    %1620 = vmatprep.subr.bf16.mxu0 0
    %1621 = vmatpush1.bf16.msra.mxu0 %v1603
    %1622 = vmatprep.subr.bf16.mxu0 0
    %1623 = vmatpush1.bf16.msra.mxu0 %v1604
    %1624 = vmatprep.subr.bf16.mxu0 0
    %1625 = vmatpush1.bf16.msra.mxu0 %v1605
    %1626 = vmatprep.subr.bf16.mxu0 0
    %1627 = vmatpush1.bf16.msra.mxu0 %v1606
    %1628 = vmatprep.subr.bf16.mxu0 0
    %1629 = vmatpush1.bf16.msra.mxu0 %v1607
    %1630 = vmatprep.subr.bf16.mxu0 0
    %1631 = vmatpush1.bf16.msra.mxu0 %v1608
    %1632 = vmatprep.subr.bf16.mxu0 0
    %1633 = vmatpush1.bf16.msra.mxu0 %v1609
    %1634 = vmatprep.subr.bf16.mxu0 0
    %1635 = vmatpush1.bf16.msra.mxu0 0
    %1636 = vmatprep.subr.bf16.mxu0 0
    %1637 = vmatpush1.bf16.msra.mxu0 0
    %1638 = vmatprep.subr.bf16.mxu0 0
    %1639 = vmatpush1.bf16.msra.mxu0 0
    %1640 = vmatprep.subr.bf16.mxu0 0
    %1641 = vmatpush1.bf16.msra.mxu0 0
    %1642 = vmatprep.subr.bf16.mxu0 0
    %1643 = vmatpush1.bf16.msra.mxu0 0
    %1644 = vmatprep.subr.bf16.mxu0 0
    %1645 = vmatpush1.bf16.msra.mxu0 0
    %1646 = vmatprep.subr.bf16.mxu0 0
    %1647 = vmatpush1.bf16.msra.mxu0 0
    %1648 = vmatprep.subr.bf16.mxu0 0
    %1649 = vmatpush1.bf16.msra.mxu0 0
    %1650 = vmatprep.mubr.bf16.mxu0 0
    %1651 = vmatmul.mubr.bf16.gmra.mrb[0].mxu0 %v1163
    %v1652 = vpop.f32.mrb[0].mxu0
    %v1653 = vadd.f32 %v1568, %v1652
    %v1654 = vpop.f32.mrb[0].mxu0
    %v1655 = vpop.f32.mrb[0].mxu0
    %v1656 = vadd.f32 %v1568, %v1655
    %v1657 = vpop.f32.mrb[0].mxu0
    %1658 = vdwg.mxu0
    %v1659 = vmul.f32 %v1421, %v1653
    %v1660 = vmul.f32 %v1422, %v1656
    %v1661 = vadd.f32 %v1541, %v1659
    %v1662 = vadd.f32 %v1544, %v1660
    %v1663 = vtanh.pop %v1661
    %v1664 = vtanh.pop %v1662
    %v1665 = vsub.f32 1.0, %v1433
    %v1666 = vsub.f32 1.0, %v1434
    %v1667 = vmul.f32 %v1665, %v1663
    %v1668 = vmul.f32 %v1666, %v1664
    %v1669 = vmul.f32 %v1433, %v1161
    %v1670 = vmul.f32 %v1434, %v1162
    %v1671 = vadd.f32 %v1667, %v1669
    %v1672 = vadd.f32 %v1668, %v1670
    %v1673 = vld [vmem:[%s18] sm:$0x1]
    %v1674 = vmul.f32 %v1671, %v1671
    %v1675 = vmul.f32 %v1672, %v1672
    %1676 = vadd.xlane.f32.xlu0 %v1674
    %v1677 = vpop.xlane.xlu0 %1676
    %1678 = vadd.xlane.f32.xlu0 %v1675
    %v1679 = vpop.xlane.xlu0 %1678
    %v1680 = vrsqrt.pop %v1677
    %v1681 = vmul.f32 %v1677, %v1680
    %vm1682 = vcmp.eq.f32.partialorder %v1677, inf
    %v1683 = vsel %vm1682, %v1677, %v1681
    %vm1684 = vcmp.eq.f32.partialorder %v1677, 0.0
    %v1685 = vand.u32 %v1677, 2147483648
    %v1686 = vsel %vm1684, %v1685, %v1683
    %v1687 = vrsqrt.pop %v1679
    %v1688 = vmul.f32 %v1679, %v1687
    %vm1689 = vcmp.eq.f32.partialorder %v1679, inf
    %v1690 = vsel %vm1689, %v1679, %v1688
    %vm1691 = vcmp.eq.f32.partialorder %v1679, 0.0
    %v1692 = vand.u32 %v1679, 2147483648
    %v1693 = vsel %vm1691, %v1692, %v1690
    %v1694 = vmul.f32 %v1686, 0.088388346
    %v1695 = vmul.f32 %v1693, 0.088388346
    %v1696 = vmax.f32 %v1694, 1e-08
    %v1697 = vmax.f32 %v1695, 1e-08
    %v1698 = vrcp.pop %v1696
    %v1699 = vmul.f32 %v1671, %v1698
    %v1700 = vrcp.pop %v1697
    %v1701 = vmul.f32 %v1672, %v1700
    %v1703 = vlaneseq
    %v1704 = vshrl.u32 %v1703, 7
    %v1705 = vsub.s32 0, %v1704
    %v1706 = vrot.slane %v1673, %v1705
    %v1708 = vmul.f32 %v1699, %v1706
    %v1709 = vmul.f32 %v1701, %v1706
    %v1710 = vpack.c.bf16 %v1709, %v1708
    %v1711 = vpack.c.bf16 %v1672, %v1671
    %v1712 = vld [vmem:[%s19] sm:$0xff]
    %v1713 = vld [vmem:[%s19 + $0x8] sm:$0xff]
    %v1714 = vld [vmem:[%s19 + $0x10] sm:$0xff]
    %v1715 = vld [vmem:[%s19 + $0x18] sm:$0xff]
    %v1716 = vld [vmem:[%s19 + $0x20] sm:$0xff]
    %v1717 = vld [vmem:[%s19 + $0x28] sm:$0xff]
    %v1718 = vld [vmem:[%s19 + $0x30] sm:$0xff]
    %v1719 = vld [vmem:[%s19 + $0x38] sm:$0xff]
    %v1720 = vld [vmem:[%s19 + $0x40] sm:$0xff]
    %v1721 = vld [vmem:[%s19 + $0x48] sm:$0xff]
    %v1722 = vld [vmem:[%s19 + $0x50] sm:$0xff]
    %v1723 = vld [vmem:[%s19 + $0x58] sm:$0xff]
    %v1724 = vld [vmem:[%s19 + $0x60] sm:$0xff]
    %v1725 = vld [vmem:[%s19 + $0x68] sm:$0xff]
    %v1726 = vld [vmem:[%s19 + $0x70] sm:$0xff]
    %v1727 = vld [vmem:[%s19 + $0x78] sm:$0xff]
    %v1728 = vld [vmem:[%s19 + $0x80] sm:$0xff]
    %v1729 = vld [vmem:[%s19 + $0x88] sm:$0xff]
    %v1730 = vld [vmem:[%s19 + $0x90] sm:$0xff]
    %v1731 = vld [vmem:[%s19 + $0x98] sm:$0xff]
    %v1732 = vld [vmem:[%s19 + $0xa0] sm:$0xff]
    %v1733 = vld [vmem:[%s19 + $0xa8] sm:$0xff]
    %v1734 = vld [vmem:[%s19 + $0xb0] sm:$0xff]
    %v1735 = vld [vmem:[%s19 + $0xb8] sm:$0xff]
    %v1736 = vld [vmem:[%s19 + $0xc0] sm:$0xff]
    %v1737 = vld [vmem:[%s19 + $0xc8] sm:$0xff]
    %v1738 = vld [vmem:[%s19 + $0xd0] sm:$0xff]
    %v1739 = vld [vmem:[%s19 + $0xd8] sm:$0xff]
    %v1740 = vld [vmem:[%s19 + $0xe0] sm:$0xff]
    %v1741 = vld [vmem:[%s19 + $0xe8] sm:$0xff]
    %v1742 = vld [vmem:[%s19 + $0xf0] sm:$0xff]
    %v1743 = vld [vmem:[%s19 + $0xf8] sm:$0xff]
    %v1744 = vld [vmem:[%s20] sm:$0x3]
    %v1746 = vlaneseq
    %v1747 = vshrl.u32 %v1746, 7
    %v1748 = vsub.s32 0, %v1747
    %v1749 = vrot.slane %v1744, %v1748
    %v1750 = vlaneseq
    %v1751 = vshrl.u32 %v1750, 7
    %v1752 = vsub.s32 1, %v1751
    %v1753 = vrot.slane %v1744, %v1752
    %v1788 = vunpack.c.l.b16 %v1712
    %v1789 = vunpack.c.h.b16 %v1712
    %v1790 = vunpack.c.l.b16 %v1713
    %v1791 = vunpack.c.h.b16 %v1713
    %v1792 = vunpack.c.l.b16 %v1714
    %v1793 = vunpack.c.h.b16 %v1714
    %v1794 = vunpack.c.l.b16 %v1715
    %v1795 = vunpack.c.h.b16 %v1715
    %v1796 = vunpack.c.l.b16 %v1716
    %v1797 = vunpack.c.h.b16 %v1716
    %v1798 = vunpack.c.l.b16 %v1717
    %v1799 = vunpack.c.h.b16 %v1717
    %v1800 = vunpack.c.l.b16 %v1718
    %v1801 = vunpack.c.h.b16 %v1718
    %v1802 = vunpack.c.l.b16 %v1719
    %v1803 = vunpack.c.h.b16 %v1719
    %v1804 = vunpack.c.l.b16 %v1720
    %v1805 = vunpack.c.h.b16 %v1720
    %v1806 = vunpack.c.l.b16 %v1721
    %v1807 = vunpack.c.h.b16 %v1721
    %v1808 = vunpack.c.l.b16 %v1722
    %v1809 = vunpack.c.h.b16 %v1722
    %v1810 = vunpack.c.l.b16 %v1723
    %v1811 = vunpack.c.h.b16 %v1723
    %v1812 = vunpack.c.l.b16 %v1724
    %v1813 = vunpack.c.h.b16 %v1724
    %v1814 = vunpack.c.l.b16 %v1725
    %v1815 = vunpack.c.h.b16 %v1725
    %v1816 = vunpack.c.l.b16 %v1726
    %v1817 = vunpack.c.h.b16 %v1726
    %v1818 = vunpack.c.l.b16 %v1727
    %v1819 = vunpack.c.h.b16 %v1727
    %v1820 = vunpack.c.l.b16 %v1728
    %v1821 = vunpack.c.h.b16 %v1728
    %v1822 = vunpack.c.l.b16 %v1729
    %v1823 = vunpack.c.h.b16 %v1729
    %v1824 = vunpack.c.l.b16 %v1730
    %v1825 = vunpack.c.h.b16 %v1730
    %v1826 = vunpack.c.l.b16 %v1731
    %v1827 = vunpack.c.h.b16 %v1731
    %v1828 = vunpack.c.l.b16 %v1732
    %v1829 = vunpack.c.h.b16 %v1732
    %v1830 = vunpack.c.l.b16 %v1733
    %v1831 = vunpack.c.h.b16 %v1733
    %v1832 = vunpack.c.l.b16 %v1734
    %v1833 = vunpack.c.h.b16 %v1734
    %v1834 = vunpack.c.l.b16 %v1735
    %v1835 = vunpack.c.h.b16 %v1735
    %v1836 = vunpack.c.l.b16 %v1736
    %v1837 = vunpack.c.h.b16 %v1736
    %v1838 = vunpack.c.l.b16 %v1737
    %v1839 = vunpack.c.h.b16 %v1737
    %v1840 = vunpack.c.l.b16 %v1738
    %v1841 = vunpack.c.h.b16 %v1738
    %v1842 = vunpack.c.l.b16 %v1739
    %v1843 = vunpack.c.h.b16 %v1739
    %v1844 = vunpack.c.l.b16 %v1740
    %v1845 = vunpack.c.h.b16 %v1740
    %v1846 = vunpack.c.l.b16 %v1741
    %v1847 = vunpack.c.h.b16 %v1741
    %v1848 = vunpack.c.l.b16 %v1742
    %v1849 = vunpack.c.h.b16 %v1742
    %v1850 = vunpack.c.l.b16 %v1743
    %v1851 = vunpack.c.h.b16 %v1743
    %v1852 = vpack.c.b16 %v1790, %v1788
    %v1853 = vpack.c.b16 %v1791, %v1789
    %v1854 = vpack.c.b16 %v1794, %v1792
    %v1855 = vpack.c.b16 %v1795, %v1793
    %v1856 = vpack.c.b16 %v1798, %v1796
    %v1857 = vpack.c.b16 %v1799, %v1797
    %v1858 = vpack.c.b16 %v1802, %v1800
    %v1859 = vpack.c.b16 %v1803, %v1801
    %v1860 = vpack.c.b16 %v1806, %v1804
    %v1861 = vpack.c.b16 %v1807, %v1805
    %v1862 = vpack.c.b16 %v1810, %v1808
    %v1863 = vpack.c.b16 %v1811, %v1809
    %v1864 = vpack.c.b16 %v1814, %v1812
    %v1865 = vpack.c.b16 %v1815, %v1813
    %v1866 = vpack.c.b16 %v1818, %v1816
    %v1867 = vpack.c.b16 %v1819, %v1817
    %v1868 = vpack.c.b16 %v1822, %v1820
    %v1869 = vpack.c.b16 %v1823, %v1821
    %v1870 = vpack.c.b16 %v1826, %v1824
    %v1871 = vpack.c.b16 %v1827, %v1825
    %v1872 = vpack.c.b16 %v1830, %v1828
    %v1873 = vpack.c.b16 %v1831, %v1829
    %v1874 = vpack.c.b16 %v1834, %v1832
    %v1875 = vpack.c.b16 %v1835, %v1833
    %v1876 = vpack.c.b16 %v1838, %v1836
    %v1877 = vpack.c.b16 %v1839, %v1837
    %v1878 = vpack.c.b16 %v1842, %v1840
    %v1879 = vpack.c.b16 %v1843, %v1841
    %v1880 = vpack.c.b16 %v1846, %v1844
    %v1881 = vpack.c.b16 %v1847, %v1845
    %v1882 = vpack.c.b16 %v1850, %v1848
    %v1883 = vpack.c.b16 %v1851, %v1849
    %1916 = vmatprep.subr.bf16.mxu0 %v1853
    %1917 = vmatpush1.bf16.msra.mxu0 %v1852
    %1918 = vmatprep.subr.bf16.mxu0 %v1855
    %1919 = vmatpush1.bf16.msra.mxu0 %v1854
    %1920 = vmatprep.subr.bf16.mxu0 %v1857
    %1921 = vmatpush1.bf16.msra.mxu0 %v1856
    %1922 = vmatprep.subr.bf16.mxu0 %v1859
    %1923 = vmatpush1.bf16.msra.mxu0 %v1858
    %1924 = vmatprep.subr.bf16.mxu0 %v1861
    %1925 = vmatpush1.bf16.msra.mxu0 %v1860
    %1926 = vmatprep.subr.bf16.mxu0 %v1863
    %1927 = vmatpush1.bf16.msra.mxu0 %v1862
    %1928 = vmatprep.subr.bf16.mxu0 %v1865
    %1929 = vmatpush1.bf16.msra.mxu0 %v1864
    %1930 = vmatprep.subr.bf16.mxu0 %v1867
    %1931 = vmatpush1.bf16.msra.mxu0 %v1866
    %1932 = vmatprep.subr.bf16.mxu0 %v1869
    %1933 = vmatpush1.bf16.msra.mxu0 %v1868
    %1934 = vmatprep.subr.bf16.mxu0 %v1871
    %1935 = vmatpush1.bf16.msra.mxu0 %v1870
    %1936 = vmatprep.subr.bf16.mxu0 %v1873
    %1937 = vmatpush1.bf16.msra.mxu0 %v1872
    %1938 = vmatprep.subr.bf16.mxu0 %v1875
    %1939 = vmatpush1.bf16.msra.mxu0 %v1874
    %1940 = vmatprep.subr.bf16.mxu0 %v1877
    %1941 = vmatpush1.bf16.msra.mxu0 %v1876
    %1942 = vmatprep.subr.bf16.mxu0 %v1879
    %1943 = vmatpush1.bf16.msra.mxu0 %v1878
    %1944 = vmatprep.subr.bf16.mxu0 %v1881
    %1945 = vmatpush1.bf16.msra.mxu0 %v1880
    %1946 = vmatprep.subr.bf16.mxu0 %v1883
    %1947 = vmatpush1.bf16.msra.mxu0 %v1882
    %1948 = vmatprep.mubr.bf16.mxu0 %v1711
    %1949 = vmatmul.mubr.bf16.gmra.mrb[0].mxu0 %v1710
    %v1950 = vpop.f32.mrb[0].mxu0
    %v1951 = vadd.f32 %v1749, %v1950
    %v1952 = vpop.f32.mrb[0].mxu0
    %v1953 = vadd.f32 %v1753, %v1952
    %v1954 = vpop.f32.mrb[0].mxu0
    %v1955 = vadd.f32 %v1749, %v1954
    %v1956 = vpop.f32.mrb[0].mxu0
    %v1957 = vadd.f32 %v1753, %v1956
    %1958 = vdwg.mxu0
    %v1959 = vmax.f32 %v1951, -60.0
    %v1960 = vmax.f32 %v1955, -60.0
    %v1961 = vsub.f32 0.0, %v1959
    %v1962 = vsub.f32 0.0, %v1960
    %v1963 = vmul.f32 %v1961, 1.442695
    %v1964 = vpow.pop %v1963
    %v1965 = vmul.f32 %v1962, 1.442695
    %v1966 = vpow.pop %v1965
    %v1967 = vadd.f32 %v1964, 1.0
    %v1968 = vadd.f32 %v1966, 1.0
    %v1969 = vrcp.pop %v1967
    %v1970 = vrcp.pop %v1968
    %v1971 = vmax.f32 %v1953, -60.0
    %v1972 = vmax.f32 %v1957, -60.0
    %v1973 = vsub.f32 0.0, %v1971
    %v1974 = vsub.f32 0.0, %v1972
    %v1975 = vmul.f32 %v1973, 1.442695
    %v1976 = vpow.pop %v1975
    %v1977 = vmul.f32 %v1974, 1.442695
    %v1978 = vpow.pop %v1977
    %v1979 = vadd.f32 %v1976, 1.0
    %v1980 = vadd.f32 %v1978, 1.0
    %v1981 = vrcp.pop %v1979
    %v1982 = vrcp.pop %v1980
    %v1983 = vld [vmem:[%s21] sm:$0xf]
    %v1984 = vld [vmem:[%s21 + $0x4] sm:$0xf]
    %v1985 = vld [vmem:[%s21 + $0x8] sm:$0xf]
    %v1986 = vld [vmem:[%s21 + $0xc] sm:$0xf]
    %v1987 = vld [vmem:[%s21 + $0x10] sm:$0xf]
    %v1988 = vld [vmem:[%s21 + $0x14] sm:$0xf]
    %v1989 = vld [vmem:[%s21 + $0x18] sm:$0xf]
    %v1990 = vld [vmem:[%s21 + $0x1c] sm:$0xf]
    %v1991 = vld [vmem:[%s21 + $0x20] sm:$0xf]
    %v1992 = vld [vmem:[%s21 + $0x24] sm:$0xf]
    %v1993 = vld [vmem:[%s21 + $0x28] sm:$0xf]
    %v1994 = vld [vmem:[%s21 + $0x2c] sm:$0xf]
    %v1995 = vld [vmem:[%s21 + $0x30] sm:$0xf]
    %v1996 = vld [vmem:[%s21 + $0x34] sm:$0xf]
    %v1997 = vld [vmem:[%s21 + $0x38] sm:$0xf]
    %v1998 = vld [vmem:[%s21 + $0x3c] sm:$0xf]
    %v1999 = vld [vmem:[%s23] sm:$0x1]
    %v2001 = vlaneseq
    %v2002 = vshrl.u32 %v2001, 7
    %v2003 = vsub.s32 0, %v2002
    %v2004 = vrot.slane %v1999, %v2003
    %v2022 = vunpack.c.l.b16 %v1983
    %v2023 = vunpack.c.l.b16 %v1984
    %v2024 = vunpack.c.l.b16 %v1985
    %v2025 = vunpack.c.l.b16 %v1986
    %v2026 = vunpack.c.l.b16 %v1987
    %v2027 = vunpack.c.l.b16 %v1988
    %v2028 = vunpack.c.l.b16 %v1989
    %v2029 = vunpack.c.l.b16 %v1990
    %v2030 = vunpack.c.l.b16 %v1991
    %v2031 = vunpack.c.l.b16 %v1992
    %v2032 = vunpack.c.l.b16 %v1993
    %v2033 = vunpack.c.l.b16 %v1994
    %v2034 = vunpack.c.l.b16 %v1995
    %v2035 = vunpack.c.l.b16 %v1996
    %v2036 = vunpack.c.l.b16 %v1997
    %v2037 = vunpack.c.l.b16 %v1998
    %v2038 = vpack.c.b16 %v2023, %v2022
    %v2039 = vpack.c.b16 %v2025, %v2024
    %v2040 = vpack.c.b16 %v2027, %v2026
    %v2041 = vpack.c.b16 %v2029, %v2028
    %v2042 = vpack.c.b16 %v2031, %v2030
    %v2043 = vpack.c.b16 %v2033, %v2032
    %v2044 = vpack.c.b16 %v2035, %v2034
    %v2045 = vpack.c.b16 %v2037, %v2036
    %2054 = vmatprep.subr.bf16.mxu0 0
    %2055 = vmatpush1.bf16.msra.mxu0 %v2038
    %2056 = vmatprep.subr.bf16.mxu0 0
    %2057 = vmatpush1.bf16.msra.mxu0 %v2039
    %2058 = vmatprep.subr.bf16.mxu0 0
    %2059 = vmatpush1.bf16.msra.mxu0 %v2040
    %2060 = vmatprep.subr.bf16.mxu0 0
    %2061 = vmatpush1.bf16.msra.mxu0 %v2041
    %2062 = vmatprep.subr.bf16.mxu0 0
    %2063 = vmatpush1.bf16.msra.mxu0 %v2042
    %2064 = vmatprep.subr.bf16.mxu0 0
    %2065 = vmatpush1.bf16.msra.mxu0 %v2043
    %2066 = vmatprep.subr.bf16.mxu0 0
    %2067 = vmatpush1.bf16.msra.mxu0 %v2044
    %2068 = vmatprep.subr.bf16.mxu0 0
    %2069 = vmatpush1.bf16.msra.mxu0 %v2045
    %2070 = vmatprep.subr.bf16.mxu0 0
    %2071 = vmatpush1.bf16.msra.mxu0 0
    %2072 = vmatprep.subr.bf16.mxu0 0
    %2073 = vmatpush1.bf16.msra.mxu0 0
    %2074 = vmatprep.subr.bf16.mxu0 0
    %2075 = vmatpush1.bf16.msra.mxu0 0
    %2076 = vmatprep.subr.bf16.mxu0 0
    %2077 = vmatpush1.bf16.msra.mxu0 0
    %2078 = vmatprep.subr.bf16.mxu0 0
    %2079 = vmatpush1.bf16.msra.mxu0 0
    %2080 = vmatprep.subr.bf16.mxu0 0
    %2081 = vmatpush1.bf16.msra.mxu0 0
    %2082 = vmatprep.subr.bf16.mxu0 0
    %2083 = vmatpush1.bf16.msra.mxu0 0
    %2084 = vmatprep.subr.bf16.mxu0 0
    %2085 = vmatpush1.bf16.msra.mxu0 0
    %2086 = vmatprep.mubr.bf16.mxu0 0
    %2087 = vmatmul.mubr.bf16.gmra.mrb[0].mxu0 %v1710
    %v2088 = vpop.f32.mrb[0].mxu0
    %v2089 = vadd.f32 %v2004, %v2088
    %v2090 = vpop.f32.mrb[0].mxu0
    %v2091 = vpop.f32.mrb[0].mxu0
    %v2092 = vadd.f32 %v2004, %v2091
    %v2093 = vpop.f32.mrb[0].mxu0
    %2094 = vdwg.mxu0
    %v2095 = vld [vmem:[%s22] sm:$0xf]
    %v2096 = vld [vmem:[%s22 + $0x4] sm:$0xf]
    %v2097 = vld [vmem:[%s22 + $0x8] sm:$0xf]
    %v2098 = vld [vmem:[%s22 + $0xc] sm:$0xf]
    %v2099 = vld [vmem:[%s22 + $0x10] sm:$0xf]
    %v2100 = vld [vmem:[%s22 + $0x14] sm:$0xf]
    %v2101 = vld [vmem:[%s22 + $0x18] sm:$0xf]
    %v2102 = vld [vmem:[%s22 + $0x1c] sm:$0xf]
    %v2103 = vld [vmem:[%s22 + $0x20] sm:$0xf]
    %v2104 = vld [vmem:[%s22 + $0x24] sm:$0xf]
    %v2105 = vld [vmem:[%s22 + $0x28] sm:$0xf]
    %v2106 = vld [vmem:[%s22 + $0x2c] sm:$0xf]
    %v2107 = vld [vmem:[%s22 + $0x30] sm:$0xf]
    %v2108 = vld [vmem:[%s22 + $0x34] sm:$0xf]
    %v2109 = vld [vmem:[%s22 + $0x38] sm:$0xf]
    %v2110 = vld [vmem:[%s22 + $0x3c] sm:$0xf]
    %v2111 = vld [vmem:[%s24] sm:$0x1]
    %v2113 = vlaneseq
    %v2114 = vshrl.u32 %v2113, 7
    %v2115 = vsub.s32 0, %v2114
    %v2116 = vrot.slane %v2111, %v2115
    %v2134 = vunpack.c.l.b16 %v2095
    %v2135 = vunpack.c.l.b16 %v2096
    %v2136 = vunpack.c.l.b16 %v2097
    %v2137 = vunpack.c.l.b16 %v2098
    %v2138 = vunpack.c.l.b16 %v2099
    %v2139 = vunpack.c.l.b16 %v2100
    %v2140 = vunpack.c.l.b16 %v2101
    %v2141 = vunpack.c.l.b16 %v2102
    %v2142 = vunpack.c.l.b16 %v2103
    %v2143 = vunpack.c.l.b16 %v2104
    %v2144 = vunpack.c.l.b16 %v2105
    %v2145 = vunpack.c.l.b16 %v2106
    %v2146 = vunpack.c.l.b16 %v2107
    %v2147 = vunpack.c.l.b16 %v2108
    %v2148 = vunpack.c.l.b16 %v2109
    %v2149 = vunpack.c.l.b16 %v2110
    %v2150 = vpack.c.b16 %v2135, %v2134
    %v2151 = vpack.c.b16 %v2137, %v2136
    %v2152 = vpack.c.b16 %v2139, %v2138
    %v2153 = vpack.c.b16 %v2141, %v2140
    %v2154 = vpack.c.b16 %v2143, %v2142
    %v2155 = vpack.c.b16 %v2145, %v2144
    %v2156 = vpack.c.b16 %v2147, %v2146
    %v2157 = vpack.c.b16 %v2149, %v2148
    %2166 = vmatprep.subr.bf16.mxu0 0
    %2167 = vmatpush1.bf16.msra.mxu0 %v2150
    %2168 = vmatprep.subr.bf16.mxu0 0
    %2169 = vmatpush1.bf16.msra.mxu0 %v2151
    %2170 = vmatprep.subr.bf16.mxu0 0
    %2171 = vmatpush1.bf16.msra.mxu0 %v2152
    %2172 = vmatprep.subr.bf16.mxu0 0
    %2173 = vmatpush1.bf16.msra.mxu0 %v2153
    %2174 = vmatprep.subr.bf16.mxu0 0
    %2175 = vmatpush1.bf16.msra.mxu0 %v2154
    %2176 = vmatprep.subr.bf16.mxu0 0
    %2177 = vmatpush1.bf16.msra.mxu0 %v2155
    %2178 = vmatprep.subr.bf16.mxu0 0
    %2179 = vmatpush1.bf16.msra.mxu0 %v2156
    %2180 = vmatprep.subr.bf16.mxu0 0
    %2181 = vmatpush1.bf16.msra.mxu0 %v2157
    %2182 = vmatprep.subr.bf16.mxu0 0
    %2183 = vmatpush1.bf16.msra.mxu0 0
    %2184 = vmatprep.subr.bf16.mxu0 0
    %2185 = vmatpush1.bf16.msra.mxu0 0
    %2186 = vmatprep.subr.bf16.mxu0 0
    %2187 = vmatpush1.bf16.msra.mxu0 0
    %2188 = vmatprep.subr.bf16.mxu0 0
    %2189 = vmatpush1.bf16.msra.mxu0 0
    %2190 = vmatprep.subr.bf16.mxu0 0
    %2191 = vmatpush1.bf16.msra.mxu0 0
    %2192 = vmatprep.subr.bf16.mxu0 0
    %2193 = vmatpush1.bf16.msra.mxu0 0
    %2194 = vmatprep.subr.bf16.mxu0 0
    %2195 = vmatpush1.bf16.msra.mxu0 0
    %2196 = vmatprep.subr.bf16.mxu0 0
    %2197 = vmatpush1.bf16.msra.mxu0 0
    %2198 = vmatprep.mubr.bf16.mxu0 0
    %2199 = vmatmul.mubr.bf16.gmra.mrb[0].mxu0 %v1711
    %v2200 = vpop.f32.mrb[0].mxu0
    %v2201 = vadd.f32 %v2116, %v2200
    %v2202 = vpop.f32.mrb[0].mxu0
    %v2203 = vpop.f32.mrb[0].mxu0
    %v2204 = vadd.f32 %v2116, %v2203
    %v2205 = vpop.f32.mrb[0].mxu0
    %2206 = vdwg.mxu0
    %v2207 = vmul.f32 %v1969, %v2201
    %v2208 = vmul.f32 %v1970, %v2204
    %v2209 = vadd.f32 %v2089, %v2207
    %v2210 = vadd.f32 %v2092, %v2208
    %v2211 = vtanh.pop %v2209
    %v2212 = vtanh.pop %v2210
    %v2213 = vsub.f32 1.0, %v1981
    %v2214 = vsub.f32 1.0, %v1982
    %v2215 = vmul.f32 %v2213, %v2211
    %v2216 = vmul.f32 %v2214, %v2212
    %v2217 = vmul.f32 %v1981, %v1671
    %v2218 = vmul.f32 %v1982, %v1672
    %v2219 = vadd.f32 %v2215, %v2217
    %v2220 = vadd.f32 %v2216, %v2218
    %2221 = vst [vmem:[#allocation2] sm:$0xff] %v2219
    %2222 = vst [vmem:[#allocation2 + $0x8] sm:$0xff] %v2220
    // Predicated region
    $region102: #{transformer_block.1} parent=1 // pred_check
      _
    $region103: #{transformer_block.1} parent=1 // pred_check_branch
      %2224 = sbr.rel (0) target = $region105
    $region104: #{transformer_block.1} parent=1 // pred_region
      %s2226 = ssub.s32 256, 256
      %2227 = vsyncadd [#allocation3], %s2226
      %s2228 = sshll.u32 [#allocation2], 4
      %s2229 = int_to_ptr.vmem [resolvable:$true] %s2228
      %2234 = dma.vmem_to_hbm [thread:$0]  %s2229, 256, %s25, [#allocation3], 128, 128, 8
    $region105: #{transformer_block.1} parent=1 // pred_fallthru
      _
    // Predicated region
    $region106: #{transformer_block.1} parent=1 // pred_check
      _
    $region107: #{transformer_block.1} parent=1 // pred_check_branch
      %2236 = sbr.rel (0) target = $region109
    $region108: #{transformer_block.1} parent=1 // pred_region
      %2237 = dma.done [#allocation3], 256
    $region109: #{transformer_block.1} parent=1 // pred_fallthru
      _
    %2238 = vsyncpa [#allocation3], 1

</llo_original>
